<compile_context>
chip_gen: v6e
topology: v6e:2x2x1
jax: 0.10.0
libtpu: 0.0.40
codegen_flags: <defaults>
</compile_context>

<pallas_src>
import jax
import jax.numpy as jnp
import numpy as np
from jax.experimental import pallas as pl
from jax.experimental.pallas import tpu as pltpu


# --------------------------------------------------------------------------------------
# Kernels
# --------------------------------------------------------------------------------------
def _layer1_kernel(x_ref, w1_ref, b1_ref, h1_ref, acc_ref):
    """h1 = relu(x @ W1 + b1), streamed along K (grid axis 1), split along H1 (grid axis 0).

    acc_ref is a resident f32 accumulator for this core's H1 slice.  Grid axis 0
    ("parallel") splits H1 across TensorCores on 2-TC parts; grid axis 1 ("arbitrary")
    is the K reduction of the first, dominant matmul.
    """
    k = pl.program_id(1)

    @pl.when(k == 0)
    def _():
        acc_ref[...] = jnp.zeros_like(acc_ref)

    # x and W1 arrive already in the compute dtype (bf16 by default); f32 MXU accumulation.
    acc_ref[...] += jnp.dot(x_ref[...], w1_ref[...], preferred_element_type=jnp.float32)

    @pl.when(k == pl.num_programs(1) - 1)
    def _():
        h1_ref[...] = jnp.maximum(acc_ref[...] + b1_ref[...], 0.0).astype(h1_ref.dtype)


def _tail_kernel(h1_ref, w2_ref, b2_ref, w3_ref, b3_ref, o_ref):
    """out = relu(h1 @ W2 + b2) @ W3 + b3  (tiny: everything resident in VMEM)."""
    h2 = jnp.dot(h1_ref[...].astype(w2_ref.dtype), w2_ref[...],
                 preferred_element_type=jnp.float32) + b2_ref[...]
    h2 = jnp.maximum(h2, 0.0)
    out = jnp.dot(h2.astype(w3_ref.dtype), w3_ref[...],
                  preferred_element_type=jnp.float32) + b3_ref[...]
    o_ref[...] = out.astype(o_ref.dtype)


# --------------------------------------------------------------------------------------
# Planning helpers (trace-time, static)
# --------------------------------------------------------------------------------------
def _vmem_capacity_bytes():
    """Physical per-core VMEM; conservative 64 MiB fallback (valid on every generation)."""
    try:
        info = pltpu.get_tpu_info()
        cap = int(getattr(info, "vmem_capacity_bytes", 0) or 0)
        if cap > 0:
            return cap
    except Exception:
        pass
    return 64 << 20


def _num_h1_splits(h1):
    """2 on 2-TensorCore parts (v7x) when the H1 halves stay 128-aligned, else 1."""
    n = 1
    try:
        kind = jax.devices()[0].device_kind.lower()
        if "v7" in kind or "7x" in kind:
            n = 2
    except Exception:
        n = 1
    if n > 1 and (h1 % n != 0 or (h1 // n) % 128 != 0):
        n = 1
    return n


def _plan_layer1(b, d_in, hs, x_bytes, w_bytes):
    """Pick the K tile (largest 128-multiple divisor of d_in that fits VMEM) and vmem limit."""
    cap = _vmem_capacity_bytes()
    # ~85% of physical (headroom for Mosaic internal scratch); never ask for >~100 MiB.
    budget = min(int(cap * 0.85), 100 << 20)

    pad_b = max(b, 8)
    fixed = (2 * 8 * hs * 4          # b1, sublane-padded, double-buffered
             + pad_b * hs * 4        # f32 accumulator scratch
             + 2 * pad_b * hs * 4)   # h1 output block, double-buffered
    per_k = 2 * (hs * w_bytes + b * x_bytes)   # double-buffered W1 + x slabs, per K element
    tile_budget = budget - fixed - (4 << 20)

    if d_in % 128 == 0:
        tk = 128
        k = 128
        while k <= d_in:
            if d_in % k == 0 and k * per_k <= tile_budget:
                tk = k
            k += 128
    else:
        tk = d_in                    # no clean 128 tiling: single K step

    need = fixed + tk * per_k
    vmem_limit = int(min(budget, max(need + need // 4 + (4 << 20), 32 << 20)))
    vmem_limit = int(min(cap, max(vmem_limit, need + (2 << 20))))
    return tk, vmem_limit


# --------------------------------------------------------------------------------------
# Public API
# --------------------------------------------------------------------------------------
def prepare_prior_pred_params(w1, b1, w2, b2, w3, b3, weights_dtype=jnp.bfloat16):
    """Cast weights ONCE, outside the jitted forward (biases stay f32, shaped (1, N))."""
    cast_w = lambda w: jnp.asarray(w, dtype=weights_dtype)
    cast_b = lambda b: jnp.asarray(b, dtype=jnp.float32).reshape(1, -1)
    return (cast_w(w1), cast_b(b1), cast_w(w2), cast_b(b2), cast_w(w3), cast_b(b3))


@jax.jit
def prior_pred_net(x, params):
    """x: (B, C, H, W) float32 (NCHW). params: output of prepare_prior_pred_params.
    Returns pi: (B, 4)."""
    w1, b1, w2, b2, w3, b3 = params
    B = x.shape[0]
    D_in, H1 = w1.shape
    H2 = w2.shape[1]
    OUT = w3.shape[1]

    # Same as torch's x.view(B, -1); single tiny activation cast to the weight dtype.
    x2d = x.reshape(B, -1).astype(w1.dtype)
    x_bytes = x2d.dtype.itemsize
    w_bytes = jnp.dtype(w1.dtype).itemsize

    n_split = _num_h1_splits(H1)
    Hs = H1 // n_split
    tk, vmem_limit = _plan_layer1(B, D_in, Hs, x_bytes, w_bytes)
    nk = D_in // tk

    # ---------------- layer 1: h1 = relu(x @ W1 + b1), HBM-bound W1 stream ------------
    flops1 = 2 * B * D_in * H1
    bytes1 = (B * D_in * x_bytes + D_in * H1 * w_bytes + H1 * 4 + B * H1 * 4)
    h1 = pl.pallas_call(
        _layer1_kernel,
        out_shape=jax.ShapeDtypeStruct((B, H1), jnp.float32),
        grid_spec=pltpu.PrefetchScalarGridSpec(
            num_scalar_prefetch=0,
            grid=(n_split, nk),
            in_specs=[
                pl.BlockSpec((B, tk),  lambda s, k: (0, k)),   # x slab along K (tiny)
                pl.BlockSpec((tk, Hs), lambda s, k: (k, s)),   # W1: streamed K, split H1
                pl.BlockSpec((1, Hs),  lambda s, k: (0, s)),   # b1 (resident)
            ],
            out_specs=pl.BlockSpec((B, Hs), lambda s, k: (0, s)),
            scratch_shapes=[pltpu.VMEM((B, Hs), jnp.float32)],
        ),
        compiler_params=pltpu.CompilerParams(
            dimension_semantics=("parallel", "arbitrary"),
            vmem_limit_bytes=vmem_limit,
        ),
        cost_estimate=pl.CostEstimate(flops=flops1, transcendentals=0,
                                      bytes_accessed=bytes1),
    )(x2d, w1, b1)

    # ---------------- tail: out = relu(h1 @ W2 + b2) @ W3 + b3 (tiny) -----------------
    flops2 = 2 * B * (H1 * H2 + H2 * OUT)
    bytes2 = (B * H1 * 4 + H1 * H2 * w_bytes + H2 * 4
              + H2 * OUT * w_bytes + OUT * 4 + B * OUT * 4)
    pi = pl.pallas_call(
        _tail_kernel,
        out_shape=jax.ShapeDtypeStruct((B, OUT), x.dtype),
        grid_spec=pltpu.PrefetchScalarGridSpec(
            num_scalar_prefetch=0,
            grid=(1,),
            in_specs=[
                pl.BlockSpec((B, H1),  lambda i: (0, 0)),
                pl.BlockSpec((H1, H2), lambda i: (0, 0)),
                pl.BlockSpec((1, H2),  lambda i: (0, 0)),
                pl.BlockSpec((H2, OUT), lambda i: (0, 0)),
                pl.BlockSpec((1, OUT), lambda i: (0, 0)),
            ],
            out_specs=pl.BlockSpec((B, OUT), lambda i: (0, 0)),
        ),
        cost_estimate=pl.CostEstimate(flops=flops2, transcendentals=0,
                                      bytes_accessed=bytes2),
    )(h1, w2, b2, w3, b3)
    return pi


# --------------------------------------------------------------------------------------
# Demo / self-test
# --------------------------------------------------------------------------------------
def _torch_like_linear_init(key, fan_in, fan_out):
    """Deterministic init mirroring nn.Linear defaults: U(-1/sqrt(fan_in), 1/sqrt(fan_in))."""
    kw, kb = jax.random.split(key)
    bound = 1.0 / np.sqrt(fan_in)
    w = jax.random.uniform(kw, (fan_in, fan_out), jnp.float32, -bound, bound)
    b = jax.random.uniform(kb, (1, fan_out), jnp.float32, -bound, bound)
    return w, b


if __name__ == "__main__":
    # Scaled-down but structurally identical dims: C=64 (vs 1024), 6x6 spatial.
    B, C, H, W = 2, 64, 6, 6
    D_in = C * H * W          # 2304  (module: 1024*6*6 = 36864)
    H1 = C * 3                # 192   (module: 1024*3  = 3072)
    H2 = 256                  # 256
    OUT = 4                   # 4

    key = jax.random.PRNGKey(0)
    kx, k1, k2, k3 = jax.random.split(key, 4)

    x = jax.random.normal(kx, (B, C, H, W), jnp.float32)
    w1, b1 = _torch_like_linear_init(k1, D_in, H1)
    w2, b2 = _torch_like_linear_init(k2, H1, H2)
    w3, b3 = _torch_like_linear_init(k3, H2, OUT)

    xf = x.reshape(B, -1)

    # --- f32-weight path: must match the f32 reference tightly. -------------------------
    params_f32 = prepare_prior_pred_params(w1, b1, w2, b2, w3, b3,
                                           weights_dtype=jnp.float32)
    pi_f32 = jax.block_until_ready(prior_pred_net(x, params_f32))
    h1r = jnp.maximum(xf @ w1 + b1, 0.0)
    h2r = jnp.maximum(h1r @ w2 + b2, 0.0)
    ref_f32 = h2r @ w3 + b3
    np.testing.assert_allclose(np.asarray(pi_f32), np.asarray(ref_f32),
                               rtol=1e-5, atol=1e-5)

    # --- bf16-weight path (default, bandwidth-optimized): compare to a bf16-matched ref. -
    params_bf16 = prepare_prior_pred_params(w1, b1, w2, b2, w3, b3)   # bf16 weights
    pi_bf16 = jax.block_until_ready(prior_pred_net(x, params_bf16))
    w1b, w2b, w3b = (w.astype(jnp.bfloat16) for w in (w1, w2, w3))
    h1b = jnp.maximum(jnp.dot(xf.astype(jnp.bfloat16), w1b,
                              preferred_element_type=jnp.float32) + b1, 0.0)
    h2b = jnp.maximum(jnp.dot(h1b.astype(jnp.bfloat16), w2b,
                              preferred_element_type=jnp.float32) + b2, 0.0)
    ref_bf16 = jnp.dot(h2b.astype(jnp.bfloat16), w3b,
                       preferred_element_type=jnp.float32) + b3
    np.testing.assert_allclose(np.asarray(pi_bf16), np.asarray(ref_bf16),
                               rtol=5e-3, atol=5e-3)

    print("KERNEL_OK")
</pallas_src>

<mosaic_0001>
module attributes {stable_mosaic.version = 11 : i64} {
  func.func @_layer1_kernel(%arg0: i32, %arg1: i32, %arg2: memref<2x2304xf32, #tpu.memory_space<vmem>>, %arg3: memref<2304x192xf32, #tpu.memory_space<vmem>>, %arg4: memref<1x192xf32, #tpu.memory_space<vmem>>, %arg5: memref<2x192xf32, #tpu.memory_space<vmem>>, %arg6: memref<2x192xf32, #tpu.memory_space<vmem>>) attributes {dimension_semantics = [#tpu.dimension_semantics<parallel>, #tpu.dimension_semantics<arbitrary>], iteration_bounds = array<i64: 1, 1>, scalar_prefetch = 0 : i64, scratch_operands = 1 : i64, tpu.core_type = #tpu.core_type<tc>, window_params = [{transform_indices = @transform_0, window_bounds = array<i64: 2, 2304>}, {transform_indices = @transform_1, window_bounds = array<i64: 2304, 192>}, {transform_indices = @transform_2, window_bounds = array<i64: 1, 192>}, {transform_indices = @transform_3, window_bounds = array<i64: 2, 192>}]} {
    %c0_i32 = arith.constant 0 : i32
    %0 = arith.cmpi eq, %arg1, %c0_i32 : i32
    %1 = arith.extui %0 : i1 to i32
    %c0_i32_0 = arith.constant 0 : i32
    %2 = arith.cmpi ne, %1, %c0_i32_0 : i32
    scf.if %2 {
      %cst_10 = arith.constant 0.000000e+00 : f32
      %12 = vector.broadcast %cst_10 : f32 to vector<2x192xf32>
      %c0_11 = arith.constant 0 : index
      %c0_12 = arith.constant 0 : index
      %13 = vector.load %arg6[%c0_11, %c0_12] : memref<2x192xf32, #tpu.memory_space<vmem>>, vector<2x192xf32>
      tpu.vector_store %arg6[%c0_11, %c0_12], %12 {strides = array<i32>} : memref<2x192xf32, #tpu.memory_space<vmem>>, vector<2x192xf32>,
    } else {
    }
    %c0 = arith.constant 0 : index
    %c0_1 = arith.constant 0 : index
    %3 = vector.load %arg6[%c0, %c0_1] : memref<2x192xf32, #tpu.memory_space<vmem>>, vector<2x192xf32>
    %c0_2 = arith.constant 0 : index
    %c0_3 = arith.constant 0 : index
    %4 = vector.load %arg2[%c0_2, %c0_3] : memref<2x2304xf32, #tpu.memory_space<vmem>>, vector<2x2304xf32>
    %c0_4 = arith.constant 0 : index
    %c0_5 = arith.constant 0 : index
    %5 = vector.load %arg3[%c0_4, %c0_5] : memref<2304x192xf32, #tpu.memory_space<vmem>>, vector<2304x192xf32>
    %cst = arith.constant dense<0.000000e+00> : vector<2x192xf32>
    %6 = tpu.matmul %4, %5, %cst {dimension_numbers = #tpu.dot_dimension_numbers<[1], [0], [0], [1], [0, 0, 1, 1], [], []>} : vector<2x2304xf32>, vector<2304x192xf32>, vector<2x192xf32> -> vector<2x192xf32>
    %7 = arith.addf %3, %6 : vector<2x192xf32>
    %c0_6 = arith.constant 0 : index
    %c0_7 = arith.constant 0 : index
    %8 = vector.load %arg6[%c0_6, %c0_7] : memref<2x192xf32, #tpu.memory_space<vmem>>, vector<2x192xf32>
    tpu.vector_store %arg6[%c0_6, %c0_7], %7 {strides = array<i32>} : memref<2x192xf32, #tpu.memory_space<vmem>>, vector<2x192xf32>,
    %c0_i32_8 = arith.constant 0 : i32
    %9 = arith.cmpi eq, %arg1, %c0_i32_8 : i32
    %10 = arith.extui %9 : i1 to i32
    %c0_i32_9 = arith.constant 0 : i32
    %11 = arith.cmpi ne, %10, %c0_i32_9 : i32
    scf.if %11 {
      %c0_10 = arith.constant 0 : index
      %c0_11 = arith.constant 0 : index
      %12 = vector.load %arg6[%c0_10, %c0_11] : memref<2x192xf32, #tpu.memory_space<vmem>>, vector<2x192xf32>
      %c0_12 = arith.constant 0 : index
      %c0_13 = arith.constant 0 : index
      %13 = vector.load %arg4[%c0_12, %c0_13] : memref<1x192xf32, #tpu.memory_space<vmem>>, vector<1x192xf32>
      %14 = vector.broadcast %13 : vector<1x192xf32> to vector<2x192xf32>
      %15 = arith.addf %12, %14 : vector<2x192xf32>
      %cst_14 = arith.constant 0.000000e+00 : f32
      %16 = vector.broadcast %cst_14 : f32 to vector<2x192xf32>
      %17 = arith.maximumf %15, %16 : vector<2x192xf32>
      %c0_15 = arith.constant 0 : index
      %c0_16 = arith.constant 0 : index
      %18 = vector.load %arg5[%c0_15, %c0_16] : memref<2x192xf32, #tpu.memory_space<vmem>>, vector<2x192xf32>
      tpu.vector_store %arg5[%c0_15, %c0_16], %17 {strides = array<i32>} : memref<2x192xf32, #tpu.memory_space<vmem>>, vector<2x192xf32>,
    } else {
    }
    return
  }
  func.func @transform_0(%arg0: i32, %arg1: i32) -> (i32, i32) {
    %c0_i32 = arith.constant 0 : i32
    %c0_i32_0 = arith.constant 0 : i32
    return %c0_i32, %arg1 : i32, i32
  }
  func.func @transform_1(%arg0: i32, %arg1: i32) -> (i32, i32) {
    %c0_i32 = arith.constant 0 : i32
    return %arg1, %arg0 : i32, i32
  }
  func.func @transform_2(%arg0: i32, %arg1: i32) -> (i32, i32) {
    %c0_i32 = arith.constant 0 : i32
    %c0_i32_0 = arith.constant 0 : i32
    return %c0_i32, %arg0 : i32, i32
  }
  func.func @transform_3(%arg0: i32, %arg1: i32) -> (i32, i32) {
    %c0_i32 = arith.constant 0 : i32
    %c0_i32_0 = arith.constant 0 : i32
    return %c0_i32, %arg0 : i32, i32
  }
}

module attributes {stable_mosaic.version = 11 : i64} {
  func.func @_tail_kernel(%arg0: i32, %arg1: memref<2x192xf32, #tpu.memory_space<vmem>>, %arg2: memref<192x256xf32, #tpu.memory_space<vmem>>, %arg3: memref<1x256xf32, #tpu.memory_space<vmem>>, %arg4: memref<256x4xf32, #tpu.memory_space<vmem>>, %arg5: memref<1x4xf32, #tpu.memory_space<vmem>>, %arg6: memref<2x4xf32, #tpu.memory_space<vmem>>) attributes {dimension_semantics = [#tpu.dimension_semantics<arbitrary>], iteration_bounds = array<i64: 1>, scalar_prefetch = 0 : i64, scratch_operands = 0 : i64, tpu.core_type = #tpu.core_type<tc>, window_params = [{pipeline_mode = #tpu.pipeline_mode<synchronous>, transform_indices = @transform_0, window_bounds = array<i64: 2, 192>}, {pipeline_mode = #tpu.pipeline_mode<synchronous>, transform_indices = @transform_1, window_bounds = array<i64: 192, 256>}, {pipeline_mode = #tpu.pipeline_mode<synchronous>, transform_indices = @transform_2, window_bounds = array<i64: 1, 256>}, {pipeline_mode = #tpu.pipeline_mode<synchronous>, transform_indices = @transform_3, window_bounds = array<i64: 256, 4>}, {pipeline_mode = #tpu.pipeline_mode<synchronous>, transform_indices = @transform_4, window_bounds = array<i64: 1, 4>}, {pipeline_mode = #tpu.pipeline_mode<synchronous>, transform_indices = @transform_5, window_bounds = array<i64: 2, 4>}]} {
    %c0 = arith.constant 0 : index
    %c0_0 = arith.constant 0 : index
    %0 = vector.load %arg1[%c0, %c0_0] : memref<2x192xf32, #tpu.memory_space<vmem>>, vector<2x192xf32>
    %c0_1 = arith.constant 0 : index
    %c0_2 = arith.constant 0 : index
    %1 = vector.load %arg2[%c0_1, %c0_2] : memref<192x256xf32, #tpu.memory_space<vmem>>, vector<192x256xf32>
    %cst = arith.constant dense<0.000000e+00> : vector<2x256xf32>
    %2 = tpu.matmul %0, %1, %cst {dimension_numbers = #tpu.dot_dimension_numbers<[1], [0], [0], [1], [0, 0, 1, 1], [], []>} : vector<2x192xf32>, vector<192x256xf32>, vector<2x256xf32> -> vector<2x256xf32>
    %c0_3 = arith.constant 0 : index
    %c0_4 = arith.constant 0 : index
    %3 = vector.load %arg3[%c0_3, %c0_4] : memref<1x256xf32, #tpu.memory_space<vmem>>, vector<1x256xf32>
    %4 = vector.broadcast %3 : vector<1x256xf32> to vector<2x256xf32>
    %5 = arith.addf %2, %4 : vector<2x256xf32>
    %cst_5 = arith.constant 0.000000e+00 : f32
    %6 = vector.broadcast %cst_5 : f32 to vector<2x256xf32>
    %7 = arith.maximumf %5, %6 : vector<2x256xf32>
    %c0_6 = arith.constant 0 : index
    %c0_7 = arith.constant 0 : index
    %8 = vector.load %arg4[%c0_6, %c0_7] : memref<256x4xf32, #tpu.memory_space<vmem>>, vector<256x4xf32>
    %cst_8 = arith.constant dense<0.000000e+00> : vector<2x4xf32>
    %9 = tpu.matmul %7, %8, %cst_8 {dimension_numbers = #tpu.dot_dimension_numbers<[1], [0], [0], [1], [0, 0, 1, 1], [], []>} : vector<2x256xf32>, vector<256x4xf32>, vector<2x4xf32> -> vector<2x4xf32>
    %c0_9 = arith.constant 0 : index
    %c0_10 = arith.constant 0 : index
    %10 = vector.load %arg5[%c0_9, %c0_10] : memref<1x4xf32, #tpu.memory_space<vmem>>, vector<1x4xf32>
    %11 = vector.broadcast %10 : vector<1x4xf32> to vector<2x4xf32>
    %12 = arith.addf %9, %11 : vector<2x4xf32>
    %c0_11 = arith.constant 0 : index
    %c0_12 = arith.constant 0 : index
    %13 = vector.load %arg6[%c0_11, %c0_12] : memref<2x4xf32, #tpu.memory_space<vmem>>, vector<2x4xf32>
    tpu.vector_store %arg6[%c0_11, %c0_12], %12 {strides = array<i32>} : memref<2x4xf32, #tpu.memory_space<vmem>>, vector<2x4xf32>,
    return
  }
  func.func @transform_0(%arg0: i32) -> (i32, i32) {
    %c0_i32 = arith.constant 0 : i32
    %c0_i32_0 = arith.constant 0 : i32
    %c0_i32_1 = arith.constant 0 : i32
    return %c0_i32, %c0_i32_0 : i32, i32
  }
  func.func @transform_1(%arg0: i32) -> (i32, i32) {
    %c0_i32 = arith.constant 0 : i32
    %c0_i32_0 = arith.constant 0 : i32
    %c0_i32_1 = arith.constant 0 : i32
    return %c0_i32, %c0_i32_0 : i32, i32
  }
  func.func @transform_2(%arg0: i32) -> (i32, i32) {
    %c0_i32 = arith.constant 0 : i32
    %c0_i32_0 = arith.constant 0 : i32
    %c0_i32_1 = arith.constant 0 : i32
    return %c0_i32, %c0_i32_0 : i32, i32
  }
  func.func @transform_3(%arg0: i32) -> (i32, i32) {
    %c0_i32 = arith.constant 0 : i32
    %c0_i32_0 = arith.constant 0 : i32
    %c0_i32_1 = arith.constant 0 : i32
    return %c0_i32, %c0_i32_0 : i32, i32
  }
  func.func @transform_4(%arg0: i32) -> (i32, i32) {
    %c0_i32 = arith.constant 0 : i32
    %c0_i32_0 = arith.constant 0 : i32
    %c0_i32_1 = arith.constant 0 : i32
    return %c0_i32, %c0_i32_0 : i32, i32
  }
  func.func @transform_5(%arg0: i32) -> (i32, i32) {
    %c0_i32 = arith.constant 0 : i32
    %c0_i32_0 = arith.constant 0 : i32
    %c0_i32_1 = arith.constant 0 : i32
    return %c0_i32, %c0_i32_0 : i32, i32
  }
}

</mosaic_0001>

<llo_original>
// kernel: prior_pred_net.3
$region0: #{prior_pred_net.3}
  #allocation0 [shape = 'u32[]', space=smem, size = 0x4, offset = 0x4, fixed_abs, tag = 'smem constant byte address 0x4 - core index']
  #allocation1 [shape = 'u32[144,128]{1,0:T(1,128)}', space=vmem, size = 0x12000, scoped, tag = 'internal scratch']
  %s0 = inlined_call_operand.vmem [shape: f32[2,192], index: 0, kind: input, shape index: {}]
  %s1 = inlined_call_operand.vmem [shape: f32[192,256], index: 1, kind: input, shape index: {}]
  %s2 = inlined_call_operand.vmem [shape: f32[1,256], index: 2, kind: input, shape index: {}]
  %s3 = inlined_call_operand.vmem [shape: f32[256,4], index: 3, kind: input, shape index: {}]
  %s4 = inlined_call_operand.vmem [shape: f32[1,4], index: 4, kind: input, shape index: {}]
  %s5 = inlined_call_operand.hbm [shape: f32[2,4], index: 5, kind: output, shape index: {}]
  %s6 = sld [smem:[#allocation0]]
  $region30: #{prior_pred_net.3} parent=0
    _
  %s8 = ssub.s32 1, %s6
  %s9 = scalar_select 0, %s8, %s6
  $region1: #{prior_pred_net.3} parent=0
    #allocation2 [shape = 'u8[1024]{0}', space=vmem, size = 0x400, scoped, tag = 'output window, operand 0, single buffered']
    #allocation3 [shape = 's32[1]{0}', space=sflag, size = 0x4, scoped, tag = 'scoped memory for prior_pred_net.3']
    %10 = vsyncpa [#allocation3], 0
    // Predicated region
    $region2: #{prior_pred_net.3} parent=1 // pred_check
      _
    $region3: #{prior_pred_net.3} parent=1 // pred_check_branch
      %12 = sbr.rel (0) target = $region5
    $region4: #{prior_pred_net.3} parent=1 // pred_region
      _
    $region5: #{prior_pred_net.3} parent=1 // pred_fallthru
      _
    // Predicated region
    $region6: #{prior_pred_net.3} parent=1 // pred_check
      _
    $region7: #{prior_pred_net.3} parent=1 // pred_check_branch
      %14 = sbr.rel (0) target = $region9
    $region8: #{prior_pred_net.3} parent=1 // pred_region
      _
    $region9: #{prior_pred_net.3} parent=1 // pred_fallthru
      _
    // Predicated region
    $region10: #{prior_pred_net.3} parent=1 // pred_check
      _
    $region11: #{prior_pred_net.3} parent=1 // pred_check_branch
      %16 = sbr.rel (0) target = $region13
    $region12: #{prior_pred_net.3} parent=1 // pred_region
      _
    $region13: #{prior_pred_net.3} parent=1 // pred_fallthru
      _
    // Predicated region
    $region14: #{prior_pred_net.3} parent=1 // pred_check
      _
    $region15: #{prior_pred_net.3} parent=1 // pred_check_branch
      %18 = sbr.rel (0) target = $region17
    $region16: #{prior_pred_net.3} parent=1 // pred_region
      _
    $region17: #{prior_pred_net.3} parent=1 // pred_fallthru
      _
    // Predicated region
    $region18: #{prior_pred_net.3} parent=1 // pred_check
      _
    $region19: #{prior_pred_net.3} parent=1 // pred_check_branch
      %20 = sbr.rel (0) target = $region21
    $region20: #{prior_pred_net.3} parent=1 // pred_region
      _
    $region21: #{prior_pred_net.3} parent=1 // pred_fallthru
      _
    %v21 = vld [vmem:[%s0] sm:$0xf]
    %v22 = vld [vmem:[%s1] sm:$0xff]
    %v23 = vld [vmem:[%s1 + $0x8] sm:$0xff]
    %v24 = vld [vmem:[%s1 + $0x10] sm:$0xff]
    %v25 = vld [vmem:[%s1 + $0x18] sm:$0xff]
    %v26 = vld [vmem:[%s1 + $0x20] sm:$0xff]
    %v27 = vld [vmem:[%s1 + $0x28] sm:$0xff]
    %v28 = vld [vmem:[%s1 + $0x30] sm:$0xff]
    %v29 = vld [vmem:[%s1 + $0x38] sm:$0xff]
    %v30 = vld [vmem:[%s1 + $0x40] sm:$0xff]
    %v31 = vld [vmem:[%s1 + $0x48] sm:$0xff]
    %v32 = vld [vmem:[%s1 + $0x50] sm:$0xff]
    %v33 = vld [vmem:[%s1 + $0x58] sm:$0xff]
    %v34 = vld [vmem:[%s1 + $0x60] sm:$0xff]
    %v35 = vld [vmem:[%s1 + $0x68] sm:$0xff]
    %v36 = vld [vmem:[%s1 + $0x70] sm:$0xff]
    %v37 = vld [vmem:[%s1 + $0x78] sm:$0xff]
    %v38 = vld [vmem:[%s1 + $0x80] sm:$0xff]
    %v39 = vld [vmem:[%s1 + $0x88] sm:$0xff]
    %v40 = vld [vmem:[%s1 + $0x90] sm:$0xff]
    %v41 = vld [vmem:[%s1 + $0x98] sm:$0xff]
    %v42 = vld [vmem:[%s1 + $0xa0] sm:$0xff]
    %v43 = vld [vmem:[%s1 + $0xa8] sm:$0xff]
    %v44 = vld [vmem:[%s1 + $0xb0] sm:$0xff]
    %v45 = vld [vmem:[%s1 + $0xb8] sm:$0xff]
    %v46 = vld [vmem:[%s1 + $0xc0] sm:$0xff]
    %v47 = vld [vmem:[%s1 + $0xc8] sm:$0xff]
    %v48 = vld [vmem:[%s1 + $0xd0] sm:$0xff]
    %v49 = vld [vmem:[%s1 + $0xd8] sm:$0xff]
    %v50 = vld [vmem:[%s1 + $0xe0] sm:$0xff]
    %v51 = vld [vmem:[%s1 + $0xe8] sm:$0xff]
    %v52 = vld [vmem:[%s1 + $0xf0] sm:$0xff]
    %v53 = vld [vmem:[%s1 + $0xf8] sm:$0xff]
    %v54 = vld [vmem:[%s1 + $0x100] sm:$0xff]
    %v55 = vld [vmem:[%s1 + $0x108] sm:$0xff]
    %v56 = vld [vmem:[%s1 + $0x110] sm:$0xff]
    %v57 = vld [vmem:[%s1 + $0x118] sm:$0xff]
    %v58 = vld [vmem:[%s1 + $0x120] sm:$0xff]
    %v59 = vld [vmem:[%s1 + $0x128] sm:$0xff]
    %v60 = vld [vmem:[%s1 + $0x130] sm:$0xff]
    %v61 = vld [vmem:[%s1 + $0x138] sm:$0xff]
    %v62 = vld [vmem:[%s1 + $0x140] sm:$0xff]
    %v63 = vld [vmem:[%s1 + $0x148] sm:$0xff]
    %v64 = vld [vmem:[%s1 + $0x150] sm:$0xff]
    %v65 = vld [vmem:[%s1 + $0x158] sm:$0xff]
    %v66 = vld [vmem:[%s1 + $0x160] sm:$0xff]
    %v67 = vld [vmem:[%s1 + $0x168] sm:$0xff]
    %v68 = vld [vmem:[%s1 + $0x170] sm:$0xff]
    %v69 = vld [vmem:[%s1 + $0x178] sm:$0xff]
    %v70 = vld [vmem:[%s2] sm:$0x3]
    %v72 = vlaneseq
    %v73 = vshrl.u32 %v72, 7
    %v74 = vsub.s32 0, %v73
    %v75 = vrot.slane %v70, %v74
    %v76 = vlaneseq
    %v77 = vshrl.u32 %v76, 7
    %v78 = vsub.s32 1, %v77
    %v79 = vrot.slane %v70, %v78
    %v84 = vunpack.c.l.s4 1983009808
    %v85 = vunpack.c.0.s8 %v84
    %v86 = vlaneseq
    %v87 = vshrl.u32 %v86, 7
    %v88 = vsub.s32 %v85, %v87
    %v89 = vrot.slane %v21, %v88
    %v90 = vcombine.high %v89, %v89
    %vm92 = vcmask 523264
    %v93 = vsel %vm92, %v90, 0
    %95 = vmatprep.subr.mxu0 %v53
    %96 = vmatpush1.msra.mxu0 %v52
    %97 = vmatprep.subr.mxu0 %v51
    %98 = vmatpush1.msra.mxu0 %v50
    %99 = vmatprep.subr.mxu0 %v49
    %100 = vmatpush1.msra.mxu0 %v48
    %101 = vmatprep.subr.mxu0 %v47
    %102 = vmatpush1.msra.mxu0 %v46
    %103 = vmatprep.subr.mxu0 %v45
    %104 = vmatpush1.msra.mxu0 %v44
    %105 = vmatprep.subr.mxu0 %v43
    %106 = vmatpush1.msra.mxu0 %v42
    %107 = vmatprep.subr.mxu0 %v41
    %108 = vmatpush1.msra.mxu0 %v40
    %109 = vmatprep.subr.mxu0 %v39
    %110 = vmatpush1.msra.mxu0 %v38
    %111 = vmatprep.subr.mxu0 %v37
    %112 = vmatpush1.msra.mxu0 %v36
    %113 = vmatprep.subr.mxu0 %v35
    %114 = vmatpush1.msra.mxu0 %v34
    %115 = vmatprep.subr.mxu0 %v33
    %116 = vmatpush1.msra.mxu0 %v32
    %117 = vmatprep.subr.mxu0 %v31
    %118 = vmatpush1.msra.mxu0 %v30
    %119 = vmatprep.subr.mxu0 %v29
    %120 = vmatpush1.msra.mxu0 %v28
    %121 = vmatprep.subr.mxu0 %v27
    %122 = vmatpush1.msra.mxu0 %v26
    %123 = vmatprep.subr.mxu0 %v25
    %124 = vmatpush1.msra.mxu0 %v24
    %125 = vmatprep.subr.mxu0 %v23
    %126 = vmatpush1.msra.mxu0 %v22
    %127 = vmatprep.subr.mxu0 0.0
    %128 = vmatpush2.msra.mxu0 0.0
    %129 = vmatprep.subr.mxu0 0.0
    %130 = vmatpush2.msra.mxu0 0.0
    %131 = vmatprep.subr.mxu0 0.0
    %132 = vmatpush2.msra.mxu0 0.0
    %133 = vmatprep.subr.mxu0 0.0
    %134 = vmatpush2.msra.mxu0 0.0
    %135 = vmatprep.subr.mxu0 0.0
    %136 = vmatpush2.msra.mxu0 0.0
    %137 = vmatprep.subr.mxu0 0.0
    %138 = vmatpush2.msra.mxu0 0.0
    %139 = vmatprep.subr.mxu0 0.0
    %140 = vmatpush2.msra.mxu0 0.0
    %141 = vmatprep.subr.mxu0 0.0
    %142 = vmatpush2.msra.mxu0 0.0
    %143 = vmatprep.subr.mxu0 %v69
    %144 = vmatpush2.msra.mxu0 %v68
    %145 = vmatprep.subr.mxu0 %v67
    %146 = vmatpush2.msra.mxu0 %v66
    %147 = vmatprep.subr.mxu0 %v65
    %148 = vmatpush2.msra.mxu0 %v64
    %149 = vmatprep.subr.mxu0 %v63
    %150 = vmatpush2.msra.mxu0 %v62
    %151 = vmatprep.subr.mxu0 %v61
    %152 = vmatpush2.msra.mxu0 %v60
    %153 = vmatprep.subr.mxu0 %v59
    %154 = vmatpush2.msra.mxu0 %v58
    %155 = vmatprep.subr.mxu0 %v57
    %156 = vmatpush2.msra.mxu0 %v56
    %157 = vmatprep.subr.mxu0 %v55
    %158 = vmatpush2.msra.mxu0 %v54
    %159 = vmatprep.mubr.f32.mxu0 %v93
    %160 = vmatmul.mubr.f32.gmra.mxu0 %v89
    %v161 = vpop.f32.mrf.mxu0
    %v162 = vadd.f32 %v75, %v161
    %v163 = vpop.f32.mrf.mxu0
    %v164 = vadd.f32 %v79, %v163
    %165 = vdwg.mxu0
    %v166 = vmax.f32 %v162, 0.0
    %v167 = vmax.f32 %v164, 0.0
    %v168 = vld [vmem:[%s3] sm:$0xff]
    %v169 = vld [vmem:[%s3 + $0x8] sm:$0xff]
    %v170 = vld [vmem:[%s3 + $0x10] sm:$0xff]
    %v171 = vld [vmem:[%s3 + $0x18] sm:$0xff]
    %v172 = vld [vmem:[%s3 + $0x20] sm:$0xff]
    %v173 = vld [vmem:[%s3 + $0x28] sm:$0xff]
    %v174 = vld [vmem:[%s3 + $0x30] sm:$0xff]
    %v175 = vld [vmem:[%s3 + $0x38] sm:$0xff]
    %v176 = vld [vmem:[%s3 + $0x40] sm:$0xff]
    %v177 = vld [vmem:[%s3 + $0x48] sm:$0xff]
    %v178 = vld [vmem:[%s3 + $0x50] sm:$0xff]
    %v179 = vld [vmem:[%s3 + $0x58] sm:$0xff]
    %v180 = vld [vmem:[%s3 + $0x60] sm:$0xff]
    %v181 = vld [vmem:[%s3 + $0x68] sm:$0xff]
    %v182 = vld [vmem:[%s3 + $0x70] sm:$0xff]
    %v183 = vld [vmem:[%s3 + $0x78] sm:$0xff]
    %v184 = vld [vmem:[%s3 + $0x80] sm:$0xff]
    %v185 = vld [vmem:[%s3 + $0x88] sm:$0xff]
    %v186 = vld [vmem:[%s3 + $0x90] sm:$0xff]
    %v187 = vld [vmem:[%s3 + $0x98] sm:$0xff]
    %v188 = vld [vmem:[%s3 + $0xa0] sm:$0xff]
    %v189 = vld [vmem:[%s3 + $0xa8] sm:$0xff]
    %v190 = vld [vmem:[%s3 + $0xb0] sm:$0xff]
    %v191 = vld [vmem:[%s3 + $0xb8] sm:$0xff]
    %v192 = vld [vmem:[%s3 + $0xc0] sm:$0xff]
    %v193 = vld [vmem:[%s3 + $0xc8] sm:$0xff]
    %v194 = vld [vmem:[%s3 + $0xd0] sm:$0xff]
    %v195 = vld [vmem:[%s3 + $0xd8] sm:$0xff]
    %v196 = vld [vmem:[%s3 + $0xe0] sm:$0xff]
    %v197 = vld [vmem:[%s3 + $0xe8] sm:$0xff]
    %v198 = vld [vmem:[%s3 + $0xf0] sm:$0xff]
    %v199 = vld [vmem:[%s3 + $0xf8] sm:$0xff]
    %v200 = vld [vmem:[%s4] sm:$0x1]
    %v202 = vlaneseq
    %v203 = vshrl.u32 %v202, 7
    %v204 = vsub.s32 0, %v203
    %v205 = vrot.slane %v200, %v204
    %207 = vmatprep.subr.mxu0 0.0
    %208 = vmatpush1.msra.mxu0 %v183
    %209 = vmatprep.subr.mxu0 0.0
    %210 = vmatpush1.msra.mxu0 %v182
    %211 = vmatprep.subr.mxu0 0.0
    %212 = vmatpush1.msra.mxu0 %v181
    %213 = vmatprep.subr.mxu0 0.0
    %214 = vmatpush1.msra.mxu0 %v180
    %215 = vmatprep.subr.mxu0 0.0
    %216 = vmatpush1.msra.mxu0 %v179
    %217 = vmatprep.subr.mxu0 0.0
    %218 = vmatpush1.msra.mxu0 %v178
    %219 = vmatprep.subr.mxu0 0.0
    %220 = vmatpush1.msra.mxu0 %v177
    %221 = vmatprep.subr.mxu0 0.0
    %222 = vmatpush1.msra.mxu0 %v176
    %223 = vmatprep.subr.mxu0 0.0
    %224 = vmatpush1.msra.mxu0 %v175
    %225 = vmatprep.subr.mxu0 0.0
    %226 = vmatpush1.msra.mxu0 %v174
    %227 = vmatprep.subr.mxu0 0.0
    %228 = vmatpush1.msra.mxu0 %v173
    %229 = vmatprep.subr.mxu0 0.0
    %230 = vmatpush1.msra.mxu0 %v172
    %231 = vmatprep.subr.mxu0 0.0
    %232 = vmatpush1.msra.mxu0 %v171
    %233 = vmatprep.subr.mxu0 0.0
    %234 = vmatpush1.msra.mxu0 %v170
    %235 = vmatprep.subr.mxu0 0.0
    %236 = vmatpush1.msra.mxu0 %v169
    %237 = vmatprep.subr.mxu0 0.0
    %238 = vmatpush1.msra.mxu0 %v168
    %239 = vmatprep.subr.mxu0 0.0
    %240 = vmatpush2.msra.mxu0 %v199
    %241 = vmatprep.subr.mxu0 0.0
    %242 = vmatpush2.msra.mxu0 %v198
    %243 = vmatprep.subr.mxu0 0.0
    %244 = vmatpush2.msra.mxu0 %v197
    %245 = vmatprep.subr.mxu0 0.0
    %246 = vmatpush2.msra.mxu0 %v196
    %247 = vmatprep.subr.mxu0 0.0
    %248 = vmatpush2.msra.mxu0 %v195
    %249 = vmatprep.subr.mxu0 0.0
    %250 = vmatpush2.msra.mxu0 %v194
    %251 = vmatprep.subr.mxu0 0.0
    %252 = vmatpush2.msra.mxu0 %v193
    %253 = vmatprep.subr.mxu0 0.0
    %254 = vmatpush2.msra.mxu0 %v192
    %255 = vmatprep.subr.mxu0 0.0
    %256 = vmatpush2.msra.mxu0 %v191
    %257 = vmatprep.subr.mxu0 0.0
    %258 = vmatpush2.msra.mxu0 %v190
    %259 = vmatprep.subr.mxu0 0.0
    %260 = vmatpush2.msra.mxu0 %v189
    %261 = vmatprep.subr.mxu0 0.0
    %262 = vmatpush2.msra.mxu0 %v188
    %263 = vmatprep.subr.mxu0 0.0
    %264 = vmatpush2.msra.mxu0 %v187
    %265 = vmatprep.subr.mxu0 0.0
    %266 = vmatpush2.msra.mxu0 %v186
    %267 = vmatprep.subr.mxu0 0.0
    %268 = vmatpush2.msra.mxu0 %v185
    %269 = vmatprep.subr.mxu0 0.0
    %270 = vmatpush2.msra.mxu0 %v184
    %271 = vmatprep.mubr.f32.mxu0 %v167
    %272 = vmatmul.mubr.f32.gmra.mxu0 %v166
    %v273 = vpop.f32.mrf.mxu0
    %v274 = vadd.f32 %v205, %v273
    %v275 = vpop.f32.mrf.mxu0
    %276 = vdwg.mxu0
    %vm277 = vcmask 25600
    %278 = vst.msk [vmem:[#allocation2] sm:$0x3] %vm277, %v274
    // Predicated region
    $region22: #{prior_pred_net.3} parent=1 // pred_check
      _
    $region23: #{prior_pred_net.3} parent=1 // pred_check_branch
      %280 = sbr.rel (0) target = $region25
    $region24: #{prior_pred_net.3} parent=1 // pred_region
      %s282 = ssub.s32 32, 32
      %283 = vsyncadd [#allocation3], %s282
      %s285 = sshll.u32 [#allocation2], 4
      %s286 = int_to_ptr.vmem [resolvable:$true] %s285
      %288 = dma.vmem_to_hbm [thread:$0]  %s286, 32, %s5, [#allocation3]
    $region25: #{prior_pred_net.3} parent=1 // pred_fallthru
      _
    // Predicated region
    $region26: #{prior_pred_net.3} parent=1 // pred_check
      _
    $region27: #{prior_pred_net.3} parent=1 // pred_check_branch
      %290 = sbr.rel (0) target = $region29
    $region28: #{prior_pred_net.3} parent=1 // pred_region
      %291 = dma.done [#allocation3], 32
    $region29: #{prior_pred_net.3} parent=1 // pred_fallthru
      _
    %292 = vsyncpa [#allocation3], 1

// kernel: prior_pred_net.2
$region0: #{prior_pred_net.2}
  #allocation0 [shape = 'u32[]', space=smem, size = 0x4, offset = 0x4, fixed_abs, tag = 'smem constant byte address 0x4 - core index']
  #allocation1 [shape = 'u32[144,128]{1,0:T(1,128)}', space=vmem, size = 0x12000, scoped, tag = 'internal scratch']
  #allocation2 [shape = 'f32[2,192]{1,0:T(2,128)}', space=vmem, size = 0x800, scoped, tag = 'scratch operand']
  %s0 = inlined_call_operand.vmem [shape: f32[2,2304], index: 0, kind: input, shape index: {}]
  %s1 = inlined_call_operand.vmem [shape: f32[2304,192], index: 1, kind: input, shape index: {}]
  %s2 = inlined_call_operand.vmem [shape: f32[1,192], index: 2, kind: input, shape index: {}]
  %s3 = inlined_call_operand.vmem [shape: f32[2,192], index: 3, kind: output, shape index: {}]
  %s4 = sld [smem:[#allocation0]]
  $region30: #{prior_pred_net.2} parent=0
    _
  %s6 = ssub.s32 1, %s4
  %s7 = scalar_select 0, %s6, %s4
  // Predicated region
  $region2: #{prior_pred_net.2} parent=0 // pred_check
    _
  $region3: #{prior_pred_net.2} parent=0 // pred_check_branch
    %9 = sbr.rel (0) target = $region5
  $region4: #{prior_pred_net.2} parent=0 // pred_region
    _
  $region5: #{prior_pred_net.2} parent=0 // pred_fallthru
    _
  // Predicated region
  $region6: #{prior_pred_net.2} parent=0 // pred_check
    _
  $region7: #{prior_pred_net.2} parent=0 // pred_check_branch
    %11 = sbr.rel (0) target = $region9
  $region8: #{prior_pred_net.2} parent=0 // pred_region
    _
  $region9: #{prior_pred_net.2} parent=0 // pred_fallthru
    _
  // Predicated region
  $region10: #{prior_pred_net.2} parent=0 // pred_check
    _
  $region11: #{prior_pred_net.2} parent=0 // pred_check_branch
    %13 = sbr.rel (0) target = $region13
  $region12: #{prior_pred_net.2} parent=0 // pred_region
    _
  $region13: #{prior_pred_net.2} parent=0 // pred_fallthru
    _
  %p14 = scmp.eq.s32.totalorder 0, 0
  // Predicated region
  $region14: #{prior_pred_net.2} parent=0 // pred_check
    %p15 = pneg %p14
  $region15: #{prior_pred_net.2} parent=0 // pred_check_branch
    %17 = sbr.rel (%p15) target = $region17
  $region16: #{prior_pred_net.2} parent=0 // pred_region
    %vm18 = vcmask 1041408
    %vm19 = vcmask 519170
    %vm20 = vmor %vm19, %vm18
    %21 = vst.msk [vmem:[#allocation2] sm:$0xf] %vm20, 0.0
  $region17: #{prior_pred_net.2} parent=0 // pred_fallthru
    _
  %v22 = vld [vmem:[#allocation2] sm:$0xf]
  %v23 = vld [vmem:[%s0] sm:$0xff]
  %v24 = vld [vmem:[%s0 + $0x8] sm:$0xff]
  %v25 = vld [vmem:[%s0 + $0x10] sm:$0xff]
  %v26 = vld [vmem:[%s0 + $0x18] sm:$0xff]
  %v27 = vld [vmem:[%s0 + $0x20] sm:$0xf]
  %v28 = vld [vmem:[%s1] sm:$0xff]
  %v29 = vld [vmem:[%s1 + $0x8] sm:$0xff]
  %v30 = vld [vmem:[%s1 + $0x10] sm:$0xff]
  %v31 = vld [vmem:[%s1 + $0x18] sm:$0xff]
  %v32 = vld [vmem:[%s1 + $0x20] sm:$0xff]
  %v33 = vld [vmem:[%s1 + $0x28] sm:$0xff]
  %v34 = vld [vmem:[%s1 + $0x30] sm:$0xff]
  %v35 = vld [vmem:[%s1 + $0x38] sm:$0xff]
  %v36 = vld [vmem:[%s1 + $0x40] sm:$0xff]
  %v37 = vld [vmem:[%s1 + $0x48] sm:$0xff]
  %v38 = vld [vmem:[%s1 + $0x50] sm:$0xff]
  %v39 = vld [vmem:[%s1 + $0x58] sm:$0xff]
  %v40 = vld [vmem:[%s1 + $0x60] sm:$0xff]
  %v41 = vld [vmem:[%s1 + $0x68] sm:$0xff]
  %v42 = vld [vmem:[%s1 + $0x70] sm:$0xff]
  %v43 = vld [vmem:[%s1 + $0x78] sm:$0xff]
  %v44 = vld [vmem:[%s1 + $0x80] sm:$0xff]
  %v45 = vld [vmem:[%s1 + $0x88] sm:$0xff]
  %v46 = vld [vmem:[%s1 + $0x90] sm:$0xff]
  %v47 = vld [vmem:[%s1 + $0x98] sm:$0xff]
  %v48 = vld [vmem:[%s1 + $0xa0] sm:$0xff]
  %v49 = vld [vmem:[%s1 + $0xa8] sm:$0xff]
  %v50 = vld [vmem:[%s1 + $0xb0] sm:$0xff]
  %v51 = vld [vmem:[%s1 + $0xb8] sm:$0xff]
  %v52 = vld [vmem:[%s1 + $0xc0] sm:$0xff]
  %v53 = vld [vmem:[%s1 + $0xc8] sm:$0xff]
  %v54 = vld [vmem:[%s1 + $0xd0] sm:$0xff]
  %v55 = vld [vmem:[%s1 + $0xd8] sm:$0xff]
  %v56 = vld [vmem:[%s1 + $0xe0] sm:$0xff]
  %v57 = vld [vmem:[%s1 + $0xe8] sm:$0xff]
  %v58 = vld [vmem:[%s1 + $0xf0] sm:$0xff]
  %v59 = vld [vmem:[%s1 + $0xf8] sm:$0xff]
  %v60 = vld [vmem:[%s1 + $0x100] sm:$0xff]
  %v61 = vld [vmem:[%s1 + $0x108] sm:$0xff]
  %v62 = vld [vmem:[%s1 + $0x110] sm:$0xff]
  %v63 = vld [vmem:[%s1 + $0x118] sm:$0xff]
  %v64 = vld [vmem:[%s1 + $0x120] sm:$0xff]
  %v65 = vld [vmem:[%s1 + $0x128] sm:$0xff]
  %v66 = vld [vmem:[%s1 + $0x130] sm:$0xff]
  %v67 = vld [vmem:[%s1 + $0x138] sm:$0xff]
  %v68 = vld [vmem:[%s1 + $0x140] sm:$0xff]
  %v69 = vld [vmem:[%s1 + $0x148] sm:$0xff]
  %v70 = vld [vmem:[%s1 + $0x150] sm:$0xff]
  %v71 = vld [vmem:[%s1 + $0x158] sm:$0xff]
  %v72 = vld [vmem:[%s1 + $0x160] sm:$0xff]
  %v73 = vld [vmem:[%s1 + $0x168] sm:$0xff]
  %v74 = vld [vmem:[%s1 + $0x170] sm:$0xff]
  %v75 = vld [vmem:[%s1 + $0x178] sm:$0xff]
  %v76 = vld [vmem:[%s1 + $0x180] sm:$0xff]
  %v77 = vld [vmem:[%s1 + $0x188] sm:$0xff]
  %v78 = vld [vmem:[%s1 + $0x190] sm:$0xff]
  %v79 = vld [vmem:[%s1 + $0x198] sm:$0xff]
  %v80 = vld [vmem:[%s1 + $0x1a0] sm:$0xff]
  %v81 = vld [vmem:[%s1 + $0x1a8] sm:$0xff]
  %v82 = vld [vmem:[%s1 + $0x1b0] sm:$0xff]
  %v83 = vld [vmem:[%s1 + $0x1b8] sm:$0xff]
  %v84 = vld [vmem:[%s1 + $0x1c0] sm:$0xff]
  %v85 = vld [vmem:[%s1 + $0x1c8] sm:$0xff]
  %v86 = vld [vmem:[%s1 + $0x1d0] sm:$0xff]
  %v87 = vld [vmem:[%s1 + $0x1d8] sm:$0xff]
  %v88 = vld [vmem:[%s1 + $0x1e0] sm:$0xff]
  %v89 = vld [vmem:[%s1 + $0x1e8] sm:$0xff]
  %v90 = vld [vmem:[%s1 + $0x1f0] sm:$0xff]
  %v91 = vld [vmem:[%s1 + $0x1f8] sm:$0xff]
  %v92 = vld [vmem:[%s1 + $0x200] sm:$0xff]
  %v93 = vld [vmem:[%s1 + $0x208] sm:$0xff]
  %v94 = vld [vmem:[%s1 + $0x210] sm:$0xff]
  %v95 = vld [vmem:[%s1 + $0x218] sm:$0xff]
  %v96 = vld [vmem:[%s1 + $0x220] sm:$0xff]
  %v97 = vld [vmem:[%s1 + $0x228] sm:$0xff]
  %v98 = vld [vmem:[%s1 + $0x230] sm:$0xff]
  %v99 = vld [vmem:[%s1 + $0x238] sm:$0xff]
  %v100 = vld [vmem:[%s1 + $0x240] sm:$0xff]
  %v101 = vld [vmem:[%s1 + $0x248] sm:$0xff]
  %v102 = vld [vmem:[%s1 + $0x250] sm:$0xff]
  %v103 = vld [vmem:[%s1 + $0x258] sm:$0xff]
  %v104 = vld [vmem:[%s1 + $0x260] sm:$0xff]
  %v105 = vld [vmem:[%s1 + $0x268] sm:$0xff]
  %v106 = vld [vmem:[%s1 + $0x270] sm:$0xff]
  %v107 = vld [vmem:[%s1 + $0x278] sm:$0xff]
  %v108 = vld [vmem:[%s1 + $0x280] sm:$0xff]
  %v109 = vld [vmem:[%s1 + $0x288] sm:$0xff]
  %v110 = vld [vmem:[%s1 + $0x290] sm:$0xff]
  %v111 = vld [vmem:[%s1 + $0x298] sm:$0xff]
  %v112 = vld [vmem:[%s1 + $0x2a0] sm:$0xff]
  %v113 = vld [vmem:[%s1 + $0x2a8] sm:$0xff]
  %v114 = vld [vmem:[%s1 + $0x2b0] sm:$0xff]
  %v115 = vld [vmem:[%s1 + $0x2b8] sm:$0xff]
  %v116 = vld [vmem:[%s1 + $0x2c0] sm:$0xff]
  %v117 = vld [vmem:[%s1 + $0x2c8] sm:$0xff]
  %v118 = vld [vmem:[%s1 + $0x2d0] sm:$0xff]
  %v119 = vld [vmem:[%s1 + $0x2d8] sm:$0xff]
  %v120 = vld [vmem:[%s1 + $0x2e0] sm:$0xff]
  %v121 = vld [vmem:[%s1 + $0x2e8] sm:$0xff]
  %v122 = vld [vmem:[%s1 + $0x2f0] sm:$0xff]
  %v123 = vld [vmem:[%s1 + $0x2f8] sm:$0xff]
  %v124 = vld [vmem:[%s1 + $0x300] sm:$0xff]
  %v125 = vld [vmem:[%s1 + $0x308] sm:$0xff]
  %v126 = vld [vmem:[%s1 + $0x310] sm:$0xff]
  %v127 = vld [vmem:[%s1 + $0x318] sm:$0xff]
  %v128 = vld [vmem:[%s1 + $0x320] sm:$0xff]
  %v129 = vld [vmem:[%s1 + $0x328] sm:$0xff]
  %v130 = vld [vmem:[%s1 + $0x330] sm:$0xff]
  %v131 = vld [vmem:[%s1 + $0x338] sm:$0xff]
  %v132 = vld [vmem:[%s1 + $0x340] sm:$0xff]
  %v133 = vld [vmem:[%s1 + $0x348] sm:$0xff]
  %v134 = vld [vmem:[%s1 + $0x350] sm:$0xff]
  %v135 = vld [vmem:[%s1 + $0x358] sm:$0xff]
  %v136 = vld [vmem:[%s1 + $0x360] sm:$0xff]
  %v137 = vld [vmem:[%s1 + $0x368] sm:$0xff]
  %v138 = vld [vmem:[%s1 + $0x370] sm:$0xff]
  %v139 = vld [vmem:[%s1 + $0x378] sm:$0xff]
  %v140 = vld [vmem:[%s1 + $0x380] sm:$0xff]
  %v141 = vld [vmem:[%s1 + $0x388] sm:$0xff]
  %v142 = vld [vmem:[%s1 + $0x390] sm:$0xff]
  %v143 = vld [vmem:[%s1 + $0x398] sm:$0xff]
  %v144 = vld [vmem:[%s1 + $0x3a0] sm:$0xff]
  %v145 = vld [vmem:[%s1 + $0x3a8] sm:$0xff]
  %v146 = vld [vmem:[%s1 + $0x3b0] sm:$0xff]
  %v147 = vld [vmem:[%s1 + $0x3b8] sm:$0xff]
  %v148 = vld [vmem:[%s1 + $0x3c0] sm:$0xff]
  %v149 = vld [vmem:[%s1 + $0x3c8] sm:$0xff]
  %v150 = vld [vmem:[%s1 + $0x3d0] sm:$0xff]
  %v151 = vld [vmem:[%s1 + $0x3d8] sm:$0xff]
  %v152 = vld [vmem:[%s1 + $0x3e0] sm:$0xff]
  %v153 = vld [vmem:[%s1 + $0x3e8] sm:$0xff]
  %v154 = vld [vmem:[%s1 + $0x3f0] sm:$0xff]
  %v155 = vld [vmem:[%s1 + $0x3f8] sm:$0xff]
  %v156 = vld [vmem:[%s1 + $0x400] sm:$0xff]
  %v157 = vld [vmem:[%s1 + $0x408] sm:$0xff]
  %v158 = vld [vmem:[%s1 + $0x410] sm:$0xff]
  %v159 = vld [vmem:[%s1 + $0x418] sm:$0xff]
  %v160 = vld [vmem:[%s1 + $0x420] sm:$0xff]
  %v161 = vld [vmem:[%s1 + $0x428] sm:$0xff]
  %v162 = vld [vmem:[%s1 + $0x430] sm:$0xff]
  %v163 = vld [vmem:[%s1 + $0x438] sm:$0xff]
  %v164 = vld [vmem:[%s1 + $0x440] sm:$0xff]
  %v165 = vld [vmem:[%s1 + $0x448] sm:$0xff]
  %v166 = vld [vmem:[%s1 + $0x450] sm:$0xff]
  %v167 = vld [vmem:[%s1 + $0x458] sm:$0xff]
  %v168 = vld [vmem:[%s1 + $0x460] sm:$0xff]
  %v169 = vld [vmem:[%s1 + $0x468] sm:$0xff]
  %v170 = vld [vmem:[%s1 + $0x470] sm:$0xff]
  %v171 = vld [vmem:[%s1 + $0x478] sm:$0xff]
  %v172 = vld [vmem:[%s1 + $0x480] sm:$0xff]
  %v173 = vld [vmem:[%s1 + $0x488] sm:$0xff]
  %v174 = vld [vmem:[%s1 + $0x490] sm:$0xff]
  %v175 = vld [vmem:[%s1 + $0x498] sm:$0xff]
  %v176 = vld [vmem:[%s1 + $0x4a0] sm:$0xff]
  %v177 = vld [vmem:[%s1 + $0x4a8] sm:$0xff]
  %v178 = vld [vmem:[%s1 + $0x4b0] sm:$0xff]
  %v179 = vld [vmem:[%s1 + $0x4b8] sm:$0xff]
  %v180 = vld [vmem:[%s1 + $0x4c0] sm:$0xff]
  %v181 = vld [vmem:[%s1 + $0x4c8] sm:$0xff]
  %v182 = vld [vmem:[%s1 + $0x4d0] sm:$0xff]
  %v183 = vld [vmem:[%s1 + $0x4d8] sm:$0xff]
  %v184 = vld [vmem:[%s1 + $0x4e0] sm:$0xff]
  %v185 = vld [vmem:[%s1 + $0x4e8] sm:$0xff]
  %v186 = vld [vmem:[%s1 + $0x4f0] sm:$0xff]
  %v187 = vld [vmem:[%s1 + $0x4f8] sm:$0xff]
  %v188 = vld [vmem:[%s1 + $0x500] sm:$0xff]
  %v189 = vld [vmem:[%s1 + $0x508] sm:$0xff]
  %v190 = vld [vmem:[%s1 + $0x510] sm:$0xff]
  %v191 = vld [vmem:[%s1 + $0x518] sm:$0xff]
  %v192 = vld [vmem:[%s1 + $0x520] sm:$0xff]
  %v193 = vld [vmem:[%s1 + $0x528] sm:$0xff]
  %v194 = vld [vmem:[%s1 + $0x530] sm:$0xff]
  %v195 = vld [vmem:[%s1 + $0x538] sm:$0xff]
  %v196 = vld [vmem:[%s1 + $0x540] sm:$0xff]
  %v197 = vld [vmem:[%s1 + $0x548] sm:$0xff]
  %v198 = vld [vmem:[%s1 + $0x550] sm:$0xff]
  %v199 = vld [vmem:[%s1 + $0x558] sm:$0xff]
  %v200 = vld [vmem:[%s1 + $0x560] sm:$0xff]
  %v201 = vld [vmem:[%s1 + $0x568] sm:$0xff]
  %v202 = vld [vmem:[%s1 + $0x570] sm:$0xff]
  %v203 = vld [vmem:[%s1 + $0x578] sm:$0xff]
  %v204 = vld [vmem:[%s1 + $0x580] sm:$0xff]
  %v205 = vld [vmem:[%s1 + $0x588] sm:$0xff]
  %v206 = vld [vmem:[%s1 + $0x590] sm:$0xff]
  %v207 = vld [vmem:[%s1 + $0x598] sm:$0xff]
  %v208 = vld [vmem:[%s1 + $0x5a0] sm:$0xff]
  %v209 = vld [vmem:[%s1 + $0x5a8] sm:$0xff]
  %v210 = vld [vmem:[%s1 + $0x5b0] sm:$0xff]
  %v211 = vld [vmem:[%s1 + $0x5b8] sm:$0xff]
  %v212 = vld [vmem:[%s1 + $0x5c0] sm:$0xff]
  %v213 = vld [vmem:[%s1 + $0x5c8] sm:$0xff]
  %v214 = vld [vmem:[%s1 + $0x5d0] sm:$0xff]
  %v215 = vld [vmem:[%s1 + $0x5d8] sm:$0xff]
  %v216 = vld [vmem:[%s1 + $0x5e0] sm:$0xff]
  %v217 = vld [vmem:[%s1 + $0x5e8] sm:$0xff]
  %v218 = vld [vmem:[%s1 + $0x5f0] sm:$0xff]
  %v219 = vld [vmem:[%s1 + $0x5f8] sm:$0xff]
  %v220 = vld [vmem:[%s1 + $0x600] sm:$0xff]
  %v221 = vld [vmem:[%s1 + $0x608] sm:$0xff]
  %v222 = vld [vmem:[%s1 + $0x610] sm:$0xff]
  %v223 = vld [vmem:[%s1 + $0x618] sm:$0xff]
  %v224 = vld [vmem:[%s1 + $0x620] sm:$0xff]
  %v225 = vld [vmem:[%s1 + $0x628] sm:$0xff]
  %v226 = vld [vmem:[%s1 + $0x630] sm:$0xff]
  %v227 = vld [vmem:[%s1 + $0x638] sm:$0xff]
  %v228 = vld [vmem:[%s1 + $0x640] sm:$0xff]
  %v229 = vld [vmem:[%s1 + $0x648] sm:$0xff]
  %v230 = vld [vmem:[%s1 + $0x650] sm:$0xff]
  %v231 = vld [vmem:[%s1 + $0x658] sm:$0xff]
  %v232 = vld [vmem:[%s1 + $0x660] sm:$0xff]
  %v233 = vld [vmem:[%s1 + $0x668] sm:$0xff]
  %v234 = vld [vmem:[%s1 + $0x670] sm:$0xff]
  %v235 = vld [vmem:[%s1 + $0x678] sm:$0xff]
  %v236 = vld [vmem:[%s1 + $0x680] sm:$0xff]
  %v237 = vld [vmem:[%s1 + $0x688] sm:$0xff]
  %v238 = vld [vmem:[%s1 + $0x690] sm:$0xff]
  %v239 = vld [vmem:[%s1 + $0x698] sm:$0xff]
  %v240 = vld [vmem:[%s1 + $0x6a0] sm:$0xff]
  %v241 = vld [vmem:[%s1 + $0x6a8] sm:$0xff]
  %v242 = vld [vmem:[%s1 + $0x6b0] sm:$0xff]
  %v243 = vld [vmem:[%s1 + $0x6b8] sm:$0xff]
  %v244 = vld [vmem:[%s1 + $0x6c0] sm:$0xff]
  %v245 = vld [vmem:[%s1 + $0x6c8] sm:$0xff]
  %v246 = vld [vmem:[%s1 + $0x6d0] sm:$0xff]
  %v247 = vld [vmem:[%s1 + $0x6d8] sm:$0xff]
  %v248 = vld [vmem:[%s1 + $0x6e0] sm:$0xff]
  %v249 = vld [vmem:[%s1 + $0x6e8] sm:$0xff]
  %v250 = vld [vmem:[%s1 + $0x6f0] sm:$0xff]
  %v251 = vld [vmem:[%s1 + $0x6f8] sm:$0xff]
  %v252 = vld [vmem:[%s1 + $0x700] sm:$0xff]
  %v253 = vld [vmem:[%s1 + $0x708] sm:$0xff]
  %v254 = vld [vmem:[%s1 + $0x710] sm:$0xff]
  %v255 = vld [vmem:[%s1 + $0x718] sm:$0xff]
  %v256 = vld [vmem:[%s1 + $0x720] sm:$0xff]
  %v257 = vld [vmem:[%s1 + $0x728] sm:$0xff]
  %v258 = vld [vmem:[%s1 + $0x730] sm:$0xff]
  %v259 = vld [vmem:[%s1 + $0x738] sm:$0xff]
  %v260 = vld [vmem:[%s1 + $0x740] sm:$0xff]
  %v261 = vld [vmem:[%s1 + $0x748] sm:$0xff]
  %v262 = vld [vmem:[%s1 + $0x750] sm:$0xff]
  %v263 = vld [vmem:[%s1 + $0x758] sm:$0xff]
  %v264 = vld [vmem:[%s1 + $0x760] sm:$0xff]
  %v265 = vld [vmem:[%s1 + $0x768] sm:$0xff]
  %v266 = vld [vmem:[%s1 + $0x770] sm:$0xff]
  %v267 = vld [vmem:[%s1 + $0x778] sm:$0xff]
  %v268 = vld [vmem:[%s1 + $0x780] sm:$0xff]
  %v269 = vld [vmem:[%s1 + $0x788] sm:$0xff]
  %v270 = vld [vmem:[%s1 + $0x790] sm:$0xff]
  %v271 = vld [vmem:[%s1 + $0x798] sm:$0xff]
  %v272 = vld [vmem:[%s1 + $0x7a0] sm:$0xff]
  %v273 = vld [vmem:[%s1 + $0x7a8] sm:$0xff]
  %v274 = vld [vmem:[%s1 + $0x7b0] sm:$0xff]
  %v275 = vld [vmem:[%s1 + $0x7b8] sm:$0xff]
  %v276 = vld [vmem:[%s1 + $0x7c0] sm:$0xff]
  %v277 = vld [vmem:[%s1 + $0x7c8] sm:$0xff]
  %v278 = vld [vmem:[%s1 + $0x7d0] sm:$0xff]
  %v279 = vld [vmem:[%s1 + $0x7d8] sm:$0xff]
  %v280 = vld [vmem:[%s1 + $0x7e0] sm:$0xff]
  %v281 = vld [vmem:[%s1 + $0x7e8] sm:$0xff]
  %v282 = vld [vmem:[%s1 + $0x7f0] sm:$0xff]
  %v283 = vld [vmem:[%s1 + $0x7f8] sm:$0xff]
  %v284 = vld [vmem:[%s1 + $0x800] sm:$0xff]
  %v285 = vld [vmem:[%s1 + $0x808] sm:$0xff]
  %v286 = vld [vmem:[%s1 + $0x810] sm:$0xff]
  %v287 = vld [vmem:[%s1 + $0x818] sm:$0xff]
  %v288 = vld [vmem:[%s1 + $0x820] sm:$0xff]
  %v289 = vld [vmem:[%s1 + $0x828] sm:$0xff]
  %v290 = vld [vmem:[%s1 + $0x830] sm:$0xff]
  %v291 = vld [vmem:[%s1 + $0x838] sm:$0xff]
  %v292 = vld [vmem:[%s1 + $0x840] sm:$0xff]
  %v293 = vld [vmem:[%s1 + $0x848] sm:$0xff]
  %v294 = vld [vmem:[%s1 + $0x850] sm:$0xff]
  %v295 = vld [vmem:[%s1 + $0x858] sm:$0xff]
  %v296 = vld [vmem:[%s1 + $0x860] sm:$0xff]
  %v297 = vld [vmem:[%s1 + $0x868] sm:$0xff]
  %v298 = vld [vmem:[%s1 + $0x870] sm:$0xff]
  %v299 = vld [vmem:[%s1 + $0x878] sm:$0xff]
  %v300 = vld [vmem:[%s1 + $0x880] sm:$0xff]
  %v301 = vld [vmem:[%s1 + $0x888] sm:$0xff]
  %v302 = vld [vmem:[%s1 + $0x890] sm:$0xff]
  %v303 = vld [vmem:[%s1 + $0x898] sm:$0xff]
  %v304 = vld [vmem:[%s1 + $0x8a0] sm:$0xff]
  %v305 = vld [vmem:[%s1 + $0x8a8] sm:$0xff]
  %v306 = vld [vmem:[%s1 + $0x8b0] sm:$0xff]
  %v307 = vld [vmem:[%s1 + $0x8b8] sm:$0xff]
  %v308 = vld [vmem:[%s1 + $0x8c0] sm:$0xff]
  %v309 = vld [vmem:[%s1 + $0x8c8] sm:$0xff]
  %v310 = vld [vmem:[%s1 + $0x8d0] sm:$0xff]
  %v311 = vld [vmem:[%s1 + $0x8d8] sm:$0xff]
  %v312 = vld [vmem:[%s1 + $0x8e0] sm:$0xff]
  %v313 = vld [vmem:[%s1 + $0x8e8] sm:$0xff]
  %v314 = vld [vmem:[%s1 + $0x8f0] sm:$0xff]
  %v315 = vld [vmem:[%s1 + $0x8f8] sm:$0xff]
  %v316 = vld [vmem:[%s1 + $0x900] sm:$0xff]
  %v317 = vld [vmem:[%s1 + $0x908] sm:$0xff]
  %v318 = vld [vmem:[%s1 + $0x910] sm:$0xff]
  %v319 = vld [vmem:[%s1 + $0x918] sm:$0xff]
  %v320 = vld [vmem:[%s1 + $0x920] sm:$0xff]
  %v321 = vld [vmem:[%s1 + $0x928] sm:$0xff]
  %v322 = vld [vmem:[%s1 + $0x930] sm:$0xff]
  %v323 = vld [vmem:[%s1 + $0x938] sm:$0xff]
  %v324 = vld [vmem:[%s1 + $0x940] sm:$0xff]
  %v325 = vld [vmem:[%s1 + $0x948] sm:$0xff]
  %v326 = vld [vmem:[%s1 + $0x950] sm:$0xff]
  %v327 = vld [vmem:[%s1 + $0x958] sm:$0xff]
  %v328 = vld [vmem:[%s1 + $0x960] sm:$0xff]
  %v329 = vld [vmem:[%s1 + $0x968] sm:$0xff]
  %v330 = vld [vmem:[%s1 + $0x970] sm:$0xff]
  %v331 = vld [vmem:[%s1 + $0x978] sm:$0xff]
  %v332 = vld [vmem:[%s1 + $0x980] sm:$0xff]
  %v333 = vld [vmem:[%s1 + $0x988] sm:$0xff]
  %v334 = vld [vmem:[%s1 + $0x990] sm:$0xff]
  %v335 = vld [vmem:[%s1 + $0x998] sm:$0xff]
  %v336 = vld [vmem:[%s1 + $0x9a0] sm:$0xff]
  %v337 = vld [vmem:[%s1 + $0x9a8] sm:$0xff]
  %v338 = vld [vmem:[%s1 + $0x9b0] sm:$0xff]
  %v339 = vld [vmem:[%s1 + $0x9b8] sm:$0xff]
  %v340 = vld [vmem:[%s1 + $0x9c0] sm:$0xff]
  %v341 = vld [vmem:[%s1 + $0x9c8] sm:$0xff]
  %v342 = vld [vmem:[%s1 + $0x9d0] sm:$0xff]
  %v343 = vld [vmem:[%s1 + $0x9d8] sm:$0xff]
  %v344 = vld [vmem:[%s1 + $0x9e0] sm:$0xff]
  %v345 = vld [vmem:[%s1 + $0x9e8] sm:$0xff]
  %v346 = vld [vmem:[%s1 + $0x9f0] sm:$0xff]
  %v347 = vld [vmem:[%s1 + $0x9f8] sm:$0xff]
  %v348 = vld [vmem:[%s1 + $0xa00] sm:$0xff]
  %v349 = vld [vmem:[%s1 + $0xa08] sm:$0xff]
  %v350 = vld [vmem:[%s1 + $0xa10] sm:$0xff]
  %v351 = vld [vmem:[%s1 + $0xa18] sm:$0xff]
  %v352 = vld [vmem:[%s1 + $0xa20] sm:$0xff]
  %v353 = vld [vmem:[%s1 + $0xa28] sm:$0xff]
  %v354 = vld [vmem:[%s1 + $0xa30] sm:$0xff]
  %v355 = vld [vmem:[%s1 + $0xa38] sm:$0xff]
  %v356 = vld [vmem:[%s1 + $0xa40] sm:$0xff]
  %v357 = vld [vmem:[%s1 + $0xa48] sm:$0xff]
  %v358 = vld [vmem:[%s1 + $0xa50] sm:$0xff]
  %v359 = vld [vmem:[%s1 + $0xa58] sm:$0xff]
  %v360 = vld [vmem:[%s1 + $0xa60] sm:$0xff]
  %v361 = vld [vmem:[%s1 + $0xa68] sm:$0xff]
  %v362 = vld [vmem:[%s1 + $0xa70] sm:$0xff]
  %v363 = vld [vmem:[%s1 + $0xa78] sm:$0xff]
  %v364 = vld [vmem:[%s1 + $0xa80] sm:$0xff]
  %v365 = vld [vmem:[%s1 + $0xa88] sm:$0xff]
  %v366 = vld [vmem:[%s1 + $0xa90] sm:$0xff]
  %v367 = vld [vmem:[%s1 + $0xa98] sm:$0xff]
  %v368 = vld [vmem:[%s1 + $0xaa0] sm:$0xff]
  %v369 = vld [vmem:[%s1 + $0xaa8] sm:$0xff]
  %v370 = vld [vmem:[%s1 + $0xab0] sm:$0xff]
  %v371 = vld [vmem:[%s1 + $0xab8] sm:$0xff]
  %v372 = vld [vmem:[%s1 + $0xac0] sm:$0xff]
  %v373 = vld [vmem:[%s1 + $0xac8] sm:$0xff]
  %v374 = vld [vmem:[%s1 + $0xad0] sm:$0xff]
  %v375 = vld [vmem:[%s1 + $0xad8] sm:$0xff]
  %v376 = vld [vmem:[%s1 + $0xae0] sm:$0xff]
  %v377 = vld [vmem:[%s1 + $0xae8] sm:$0xff]
  %v378 = vld [vmem:[%s1 + $0xaf0] sm:$0xff]
  %v379 = vld [vmem:[%s1 + $0xaf8] sm:$0xff]
  %v380 = vld [vmem:[%s1 + $0xb00] sm:$0xff]
  %v381 = vld [vmem:[%s1 + $0xb08] sm:$0xff]
  %v382 = vld [vmem:[%s1 + $0xb10] sm:$0xff]
  %v383 = vld [vmem:[%s1 + $0xb18] sm:$0xff]
  %v384 = vld [vmem:[%s1 + $0xb20] sm:$0xff]
  %v385 = vld [vmem:[%s1 + $0xb28] sm:$0xff]
  %v386 = vld [vmem:[%s1 + $0xb30] sm:$0xff]
  %v387 = vld [vmem:[%s1 + $0xb38] sm:$0xff]
  %v388 = vld [vmem:[%s1 + $0xb40] sm:$0xff]
  %v389 = vld [vmem:[%s1 + $0xb48] sm:$0xff]
  %v390 = vld [vmem:[%s1 + $0xb50] sm:$0xff]
  %v391 = vld [vmem:[%s1 + $0xb58] sm:$0xff]
  %v392 = vld [vmem:[%s1 + $0xb60] sm:$0xff]
  %v393 = vld [vmem:[%s1 + $0xb68] sm:$0xff]
  %v394 = vld [vmem:[%s1 + $0xb70] sm:$0xff]
  %v395 = vld [vmem:[%s1 + $0xb78] sm:$0xff]
  %v396 = vld [vmem:[%s1 + $0xb80] sm:$0xff]
  %v397 = vld [vmem:[%s1 + $0xb88] sm:$0xff]
  %v398 = vld [vmem:[%s1 + $0xb90] sm:$0xff]
  %v399 = vld [vmem:[%s1 + $0xb98] sm:$0xff]
  %v400 = vld [vmem:[%s1 + $0xba0] sm:$0xff]
  %v401 = vld [vmem:[%s1 + $0xba8] sm:$0xff]
  %v402 = vld [vmem:[%s1 + $0xbb0] sm:$0xff]
  %v403 = vld [vmem:[%s1 + $0xbb8] sm:$0xff]
  %v404 = vld [vmem:[%s1 + $0xbc0] sm:$0xff]
  %v405 = vld [vmem:[%s1 + $0xbc8] sm:$0xff]
  %v406 = vld [vmem:[%s1 + $0xbd0] sm:$0xff]
  %v407 = vld [vmem:[%s1 + $0xbd8] sm:$0xff]
  %v408 = vld [vmem:[%s1 + $0xbe0] sm:$0xff]
  %v409 = vld [vmem:[%s1 + $0xbe8] sm:$0xff]
  %v410 = vld [vmem:[%s1 + $0xbf0] sm:$0xff]
  %v411 = vld [vmem:[%s1 + $0xbf8] sm:$0xff]
  %v412 = vld [vmem:[%s1 + $0xc00] sm:$0xff]
  %v413 = vld [vmem:[%s1 + $0xc08] sm:$0xff]
  %v414 = vld [vmem:[%s1 + $0xc10] sm:$0xff]
  %v415 = vld [vmem:[%s1 + $0xc18] sm:$0xff]
  %v416 = vld [vmem:[%s1 + $0xc20] sm:$0xff]
  %v417 = vld [vmem:[%s1 + $0xc28] sm:$0xff]
  %v418 = vld [vmem:[%s1 + $0xc30] sm:$0xff]
  %v419 = vld [vmem:[%s1 + $0xc38] sm:$0xff]
  %v420 = vld [vmem:[%s1 + $0xc40] sm:$0xff]
  %v421 = vld [vmem:[%s1 + $0xc48] sm:$0xff]
  %v422 = vld [vmem:[%s1 + $0xc50] sm:$0xff]
  %v423 = vld [vmem:[%s1 + $0xc58] sm:$0xff]
  %v424 = vld [vmem:[%s1 + $0xc60] sm:$0xff]
  %v425 = vld [vmem:[%s1 + $0xc68] sm:$0xff]
  %v426 = vld [vmem:[%s1 + $0xc70] sm:$0xff]
  %v427 = vld [vmem:[%s1 + $0xc78] sm:$0xff]
  %v428 = vld [vmem:[%s1 + $0xc80] sm:$0xff]
  %v429 = vld [vmem:[%s1 + $0xc88] sm:$0xff]
  %v430 = vld [vmem:[%s1 + $0xc90] sm:$0xff]
  %v431 = vld [vmem:[%s1 + $0xc98] sm:$0xff]
  %v432 = vld [vmem:[%s1 + $0xca0] sm:$0xff]
  %v433 = vld [vmem:[%s1 + $0xca8] sm:$0xff]
  %v434 = vld [vmem:[%s1 + $0xcb0] sm:$0xff]
  %v435 = vld [vmem:[%s1 + $0xcb8] sm:$0xff]
  %v436 = vld [vmem:[%s1 + $0xcc0] sm:$0xff]
  %v437 = vld [vmem:[%s1 + $0xcc8] sm:$0xff]
  %v438 = vld [vmem:[%s1 + $0xcd0] sm:$0xff]
  %v439 = vld [vmem:[%s1 + $0xcd8] sm:$0xff]
  %v440 = vld [vmem:[%s1 + $0xce0] sm:$0xff]
  %v441 = vld [vmem:[%s1 + $0xce8] sm:$0xff]
  %v442 = vld [vmem:[%s1 + $0xcf0] sm:$0xff]
  %v443 = vld [vmem:[%s1 + $0xcf8] sm:$0xff]
  %v444 = vld [vmem:[%s1 + $0xd00] sm:$0xff]
  %v445 = vld [vmem:[%s1 + $0xd08] sm:$0xff]
  %v446 = vld [vmem:[%s1 + $0xd10] sm:$0xff]
  %v447 = vld [vmem:[%s1 + $0xd18] sm:$0xff]
  %v448 = vld [vmem:[%s1 + $0xd20] sm:$0xff]
  %v449 = vld [vmem:[%s1 + $0xd28] sm:$0xff]
  %v450 = vld [vmem:[%s1 + $0xd30] sm:$0xff]
  %v451 = vld [vmem:[%s1 + $0xd38] sm:$0xff]
  %v452 = vld [vmem:[%s1 + $0xd40] sm:$0xff]
  %v453 = vld [vmem:[%s1 + $0xd48] sm:$0xff]
  %v454 = vld [vmem:[%s1 + $0xd50] sm:$0xff]
  %v455 = vld [vmem:[%s1 + $0xd58] sm:$0xff]
  %v456 = vld [vmem:[%s1 + $0xd60] sm:$0xff]
  %v457 = vld [vmem:[%s1 + $0xd68] sm:$0xff]
  %v458 = vld [vmem:[%s1 + $0xd70] sm:$0xff]
  %v459 = vld [vmem:[%s1 + $0xd78] sm:$0xff]
  %v460 = vld [vmem:[%s1 + $0xd80] sm:$0xff]
  %v461 = vld [vmem:[%s1 + $0xd88] sm:$0xff]
  %v462 = vld [vmem:[%s1 + $0xd90] sm:$0xff]
  %v463 = vld [vmem:[%s1 + $0xd98] sm:$0xff]
  %v464 = vld [vmem:[%s1 + $0xda0] sm:$0xff]
  %v465 = vld [vmem:[%s1 + $0xda8] sm:$0xff]
  %v466 = vld [vmem:[%s1 + $0xdb0] sm:$0xff]
  %v467 = vld [vmem:[%s1 + $0xdb8] sm:$0xff]
  %v468 = vld [vmem:[%s1 + $0xdc0] sm:$0xff]
  %v469 = vld [vmem:[%s1 + $0xdc8] sm:$0xff]
  %v470 = vld [vmem:[%s1 + $0xdd0] sm:$0xff]
  %v471 = vld [vmem:[%s1 + $0xdd8] sm:$0xff]
  %v472 = vld [vmem:[%s1 + $0xde0] sm:$0xff]
  %v473 = vld [vmem:[%s1 + $0xde8] sm:$0xff]
  %v474 = vld [vmem:[%s1 + $0xdf0] sm:$0xff]
  %v475 = vld [vmem:[%s1 + $0xdf8] sm:$0xff]
  %v476 = vld [vmem:[%s1 + $0xe00] sm:$0xff]
  %v477 = vld [vmem:[%s1 + $0xe08] sm:$0xff]
  %v478 = vld [vmem:[%s1 + $0xe10] sm:$0xff]
  %v479 = vld [vmem:[%s1 + $0xe18] sm:$0xff]
  %v480 = vld [vmem:[%s1 + $0xe20] sm:$0xff]
  %v481 = vld [vmem:[%s1 + $0xe28] sm:$0xff]
  %v482 = vld [vmem:[%s1 + $0xe30] sm:$0xff]
  %v483 = vld [vmem:[%s1 + $0xe38] sm:$0xff]
  %v484 = vld [vmem:[%s1 + $0xe40] sm:$0xff]
  %v485 = vld [vmem:[%s1 + $0xe48] sm:$0xff]
  %v486 = vld [vmem:[%s1 + $0xe50] sm:$0xff]
  %v487 = vld [vmem:[%s1 + $0xe58] sm:$0xff]
  %v488 = vld [vmem:[%s1 + $0xe60] sm:$0xff]
  %v489 = vld [vmem:[%s1 + $0xe68] sm:$0xff]
  %v490 = vld [vmem:[%s1 + $0xe70] sm:$0xff]
  %v491 = vld [vmem:[%s1 + $0xe78] sm:$0xff]
  %v492 = vld [vmem:[%s1 + $0xe80] sm:$0xff]
  %v493 = vld [vmem:[%s1 + $0xe88] sm:$0xff]
  %v494 = vld [vmem:[%s1 + $0xe90] sm:$0xff]
  %v495 = vld [vmem:[%s1 + $0xe98] sm:$0xff]
  %v496 = vld [vmem:[%s1 + $0xea0] sm:$0xff]
  %v497 = vld [vmem:[%s1 + $0xea8] sm:$0xff]
  %v498 = vld [vmem:[%s1 + $0xeb0] sm:$0xff]
  %v499 = vld [vmem:[%s1 + $0xeb8] sm:$0xff]
  %v500 = vld [vmem:[%s1 + $0xec0] sm:$0xff]
  %v501 = vld [vmem:[%s1 + $0xec8] sm:$0xff]
  %v502 = vld [vmem:[%s1 + $0xed0] sm:$0xff]
  %v503 = vld [vmem:[%s1 + $0xed8] sm:$0xff]
  %v504 = vld [vmem:[%s1 + $0xee0] sm:$0xff]
  %v505 = vld [vmem:[%s1 + $0xee8] sm:$0xff]
  %v506 = vld [vmem:[%s1 + $0xef0] sm:$0xff]
  %v507 = vld [vmem:[%s1 + $0xef8] sm:$0xff]
  %v508 = vld [vmem:[%s1 + $0xf00] sm:$0xff]
  %v509 = vld [vmem:[%s1 + $0xf08] sm:$0xff]
  %v510 = vld [vmem:[%s1 + $0xf10] sm:$0xff]
  %v511 = vld [vmem:[%s1 + $0xf18] sm:$0xff]
  %v512 = vld [vmem:[%s1 + $0xf20] sm:$0xff]
  %v513 = vld [vmem:[%s1 + $0xf28] sm:$0xff]
  %v514 = vld [vmem:[%s1 + $0xf30] sm:$0xff]
  %v515 = vld [vmem:[%s1 + $0xf38] sm:$0xff]
  %v516 = vld [vmem:[%s1 + $0xf40] sm:$0xff]
  %v517 = vld [vmem:[%s1 + $0xf48] sm:$0xff]
  %v518 = vld [vmem:[%s1 + $0xf50] sm:$0xff]
  %v519 = vld [vmem:[%s1 + $0xf58] sm:$0xff]
  %v520 = vld [vmem:[%s1 + $0xf60] sm:$0xff]
  %v521 = vld [vmem:[%s1 + $0xf68] sm:$0xff]
  %v522 = vld [vmem:[%s1 + $0xf70] sm:$0xff]
  %v523 = vld [vmem:[%s1 + $0xf78] sm:$0xff]
  %v524 = vld [vmem:[%s1 + $0xf80] sm:$0xff]
  %v525 = vld [vmem:[%s1 + $0xf88] sm:$0xff]
  %v526 = vld [vmem:[%s1 + $0xf90] sm:$0xff]
  %v527 = vld [vmem:[%s1 + $0xf98] sm:$0xff]
  %v528 = vld [vmem:[%s1 + $0xfa0] sm:$0xff]
  %v529 = vld [vmem:[%s1 + $0xfa8] sm:$0xff]
  %v530 = vld [vmem:[%s1 + $0xfb0] sm:$0xff]
  %v531 = vld [vmem:[%s1 + $0xfb8] sm:$0xff]
  %v532 = vld [vmem:[%s1 + $0xfc0] sm:$0xff]
  %v533 = vld [vmem:[%s1 + $0xfc8] sm:$0xff]
  %v534 = vld [vmem:[%s1 + $0xfd0] sm:$0xff]
  %v535 = vld [vmem:[%s1 + $0xfd8] sm:$0xff]
  %v536 = vld [vmem:[%s1 + $0xfe0] sm:$0xff]
  %v537 = vld [vmem:[%s1 + $0xfe8] sm:$0xff]
  %v538 = vld [vmem:[%s1 + $0xff0] sm:$0xff]
  %v539 = vld [vmem:[%s1 + $0xff8] sm:$0xff]
  %v540 = vld [vmem:[%s1 + $0x1000] sm:$0xff]
  %v541 = vld [vmem:[%s1 + $0x1008] sm:$0xff]
  %v542 = vld [vmem:[%s1 + $0x1010] sm:$0xff]
  %v543 = vld [vmem:[%s1 + $0x1018] sm:$0xff]
  %v544 = vld [vmem:[%s1 + $0x1020] sm:$0xff]
  %v545 = vld [vmem:[%s1 + $0x1028] sm:$0xff]
  %v546 = vld [vmem:[%s1 + $0x1030] sm:$0xff]
  %v547 = vld [vmem:[%s1 + $0x1038] sm:$0xff]
  %v548 = vld [vmem:[%s1 + $0x1040] sm:$0xff]
  %v549 = vld [vmem:[%s1 + $0x1048] sm:$0xff]
  %v550 = vld [vmem:[%s1 + $0x1050] sm:$0xff]
  %v551 = vld [vmem:[%s1 + $0x1058] sm:$0xff]
  %v552 = vld [vmem:[%s1 + $0x1060] sm:$0xff]
  %v553 = vld [vmem:[%s1 + $0x1068] sm:$0xff]
  %v554 = vld [vmem:[%s1 + $0x1070] sm:$0xff]
  %v555 = vld [vmem:[%s1 + $0x1078] sm:$0xff]
  %v556 = vld [vmem:[%s1 + $0x1080] sm:$0xff]
  %v557 = vld [vmem:[%s1 + $0x1088] sm:$0xff]
  %v558 = vld [vmem:[%s1 + $0x1090] sm:$0xff]
  %v559 = vld [vmem:[%s1 + $0x1098] sm:$0xff]
  %v560 = vld [vmem:[%s1 + $0x10a0] sm:$0xff]
  %v561 = vld [vmem:[%s1 + $0x10a8] sm:$0xff]
  %v562 = vld [vmem:[%s1 + $0x10b0] sm:$0xff]
  %v563 = vld [vmem:[%s1 + $0x10b8] sm:$0xff]
  %v564 = vld [vmem:[%s1 + $0x10c0] sm:$0xff]
  %v565 = vld [vmem:[%s1 + $0x10c8] sm:$0xff]
  %v566 = vld [vmem:[%s1 + $0x10d0] sm:$0xff]
  %v567 = vld [vmem:[%s1 + $0x10d8] sm:$0xff]
  %v568 = vld [vmem:[%s1 + $0x10e0] sm:$0xff]
  %v569 = vld [vmem:[%s1 + $0x10e8] sm:$0xff]
  %v570 = vld [vmem:[%s1 + $0x10f0] sm:$0xff]
  %v571 = vld [vmem:[%s1 + $0x10f8] sm:$0xff]
  %v572 = vld [vmem:[%s1 + $0x1100] sm:$0xff]
  %v573 = vld [vmem:[%s1 + $0x1108] sm:$0xff]
  %v574 = vld [vmem:[%s1 + $0x1110] sm:$0xff]
  %v575 = vld [vmem:[%s1 + $0x1118] sm:$0xff]
  %v576 = vld [vmem:[%s1 + $0x1120] sm:$0xff]
  %v577 = vld [vmem:[%s1 + $0x1128] sm:$0xff]
  %v578 = vld [vmem:[%s1 + $0x1130] sm:$0xff]
  %v579 = vld [vmem:[%s1 + $0x1138] sm:$0xff]
  %v580 = vld [vmem:[%s1 + $0x1140] sm:$0xff]
  %v581 = vld [vmem:[%s1 + $0x1148] sm:$0xff]
  %v582 = vld [vmem:[%s1 + $0x1150] sm:$0xff]
  %v583 = vld [vmem:[%s1 + $0x1158] sm:$0xff]
  %v584 = vld [vmem:[%s1 + $0x1160] sm:$0xff]
  %v585 = vld [vmem:[%s1 + $0x1168] sm:$0xff]
  %v586 = vld [vmem:[%s1 + $0x1170] sm:$0xff]
  %v587 = vld [vmem:[%s1 + $0x1178] sm:$0xff]
  %v588 = vld [vmem:[%s1 + $0x1180] sm:$0xff]
  %v589 = vld [vmem:[%s1 + $0x1188] sm:$0xff]
  %v590 = vld [vmem:[%s1 + $0x1190] sm:$0xff]
  %v591 = vld [vmem:[%s1 + $0x1198] sm:$0xff]
  %v592 = vld [vmem:[%s1 + $0x11a0] sm:$0xff]
  %v593 = vld [vmem:[%s1 + $0x11a8] sm:$0xff]
  %v594 = vld [vmem:[%s1 + $0x11b0] sm:$0xff]
  %v595 = vld [vmem:[%s1 + $0x11b8] sm:$0xff]
  %v596 = vld [vmem:[%s1 + $0x11c0] sm:$0xff]
  %v597 = vld [vmem:[%s1 + $0x11c8] sm:$0xff]
  %v598 = vld [vmem:[%s1 + $0x11d0] sm:$0xff]
  %v599 = vld [vmem:[%s1 + $0x11d8] sm:$0xff]
  %v600 = vld [vmem:[%s1 + $0x11e0] sm:$0xff]
  %v601 = vld [vmem:[%s1 + $0x11e8] sm:$0xff]
  %v602 = vld [vmem:[%s1 + $0x11f0] sm:$0xff]
  %v603 = vld [vmem:[%s1 + $0x11f8] sm:$0xff]
  %v609 = vcombine.high %v23, %v23
  %v611 = vunpack.c.l.s4 1983009808
  %v612 = vunpack.c.0.s8 %v611
  %v613 = vlaneseq
  %v614 = vshrl.u32 %v613, 7
  %v615 = vsub.s32 %v612, %v614
  %v616 = vrot.slane %v23, %v615
  %v618 = vunpack.c.l.s4 1983009808
  %v619 = vunpack.c.0.s8 %v618
  %v620 = vlaneseq
  %v621 = vshrl.u32 %v620, 7
  %v622 = vsub.s32 %v619, %v621
  %v623 = vrot.slane %v609, %v622
  %v624 = vcombine.high %v616, %v616
  %v625 = vcombine.high %v623, %v623
  %v626 = vcombine.high %v24, %v24
  %v628 = vunpack.c.l.s4 1983009808
  %v629 = vunpack.c.0.s8 %v628
  %v630 = vlaneseq
  %v631 = vshrl.u32 %v630, 7
  %v632 = vsub.s32 %v629, %v631
  %v633 = vrot.slane %v24, %v632
  %v635 = vunpack.c.l.s4 1983009808
  %v636 = vunpack.c.0.s8 %v635
  %v637 = vlaneseq
  %v638 = vshrl.u32 %v637, 7
  %v639 = vsub.s32 %v636, %v638
  %v640 = vrot.slane %v626, %v639
  %v641 = vcombine.high %v633, %v633
  %v642 = vcombine.high %v640, %v640
  %v643 = vcombine.high %v25, %v25
  %v645 = vunpack.c.l.s4 1983009808
  %v646 = vunpack.c.0.s8 %v645
  %v647 = vlaneseq
  %v648 = vshrl.u32 %v647, 7
  %v649 = vsub.s32 %v646, %v648
  %v650 = vrot.slane %v25, %v649
  %v652 = vunpack.c.l.s4 1983009808
  %v653 = vunpack.c.0.s8 %v652
  %v654 = vlaneseq
  %v655 = vshrl.u32 %v654, 7
  %v656 = vsub.s32 %v653, %v655
  %v657 = vrot.slane %v643, %v656
  %v658 = vcombine.high %v650, %v650
  %v659 = vcombine.high %v657, %v657
  %v660 = vcombine.high %v26, %v26
  %v662 = vunpack.c.l.s4 1983009808
  %v663 = vunpack.c.0.s8 %v662
  %v664 = vlaneseq
  %v665 = vshrl.u32 %v664, 7
  %v666 = vsub.s32 %v663, %v665
  %v667 = vrot.slane %v26, %v666
  %v669 = vunpack.c.l.s4 1983009808
  %v670 = vunpack.c.0.s8 %v669
  %v671 = vlaneseq
  %v672 = vshrl.u32 %v671, 7
  %v673 = vsub.s32 %v670, %v672
  %v674 = vrot.slane %v660, %v673
  %v675 = vcombine.high %v667, %v667
  %v676 = vcombine.high %v674, %v674
  %v678 = vunpack.c.l.s4 1983009808
  %v679 = vunpack.c.0.s8 %v678
  %v680 = vlaneseq
  %v681 = vshrl.u32 %v680, 7
  %v682 = vsub.s32 %v679, %v681
  %v683 = vrot.slane %v27, %v682
  %v684 = vcombine.high %v683, %v683
  %703 = vmatprep.subr.mxu0 %v59
  %704 = vmatpush1.msra.mxu0 %v58
  %705 = vmatprep.subr.mxu0 %v57
  %706 = vmatpush1.msra.mxu0 %v56
  %707 = vmatprep.subr.mxu0 %v55
  %708 = vmatpush1.msra.mxu0 %v54
  %709 = vmatprep.subr.mxu0 %v53
  %710 = vmatpush1.msra.mxu0 %v52
  %711 = vmatprep.subr.mxu0 %v51
  %712 = vmatpush1.msra.mxu0 %v50
  %713 = vmatprep.subr.mxu0 %v49
  %714 = vmatpush1.msra.mxu0 %v48
  %715 = vmatprep.subr.mxu0 %v47
  %716 = vmatpush1.msra.mxu0 %v46
  %717 = vmatprep.subr.mxu0 %v45
  %718 = vmatpush1.msra.mxu0 %v44
  %719 = vmatprep.subr.mxu0 %v43
  %720 = vmatpush1.msra.mxu0 %v42
  %721 = vmatprep.subr.mxu0 %v41
  %722 = vmatpush1.msra.mxu0 %v40
  %723 = vmatprep.subr.mxu0 %v39
  %724 = vmatpush1.msra.mxu0 %v38
  %725 = vmatprep.subr.mxu0 %v37
  %726 = vmatpush1.msra.mxu0 %v36
  %727 = vmatprep.subr.mxu0 %v35
  %728 = vmatpush1.msra.mxu0 %v34
  %729 = vmatprep.subr.mxu0 %v33
  %730 = vmatpush1.msra.mxu0 %v32
  %731 = vmatprep.subr.mxu0 %v31
  %732 = vmatpush1.msra.mxu0 %v30
  %733 = vmatprep.subr.mxu0 %v29
  %734 = vmatpush1.msra.mxu0 %v28
  %735 = vmatprep.subr.mxu0 %v91
  %736 = vmatpush2.msra.mxu0 %v90
  %737 = vmatprep.subr.mxu0 %v89
  %738 = vmatpush2.msra.mxu0 %v88
  %739 = vmatprep.subr.mxu0 %v87
  %740 = vmatpush2.msra.mxu0 %v86
  %741 = vmatprep.subr.mxu0 %v85
  %742 = vmatpush2.msra.mxu0 %v84
  %743 = vmatprep.subr.mxu0 %v83
  %744 = vmatpush2.msra.mxu0 %v82
  %745 = vmatprep.subr.mxu0 %v81
  %746 = vmatpush2.msra.mxu0 %v80
  %747 = vmatprep.subr.mxu0 %v79
  %748 = vmatpush2.msra.mxu0 %v78
  %749 = vmatprep.subr.mxu0 %v77
  %750 = vmatpush2.msra.mxu0 %v76
  %751 = vmatprep.subr.mxu0 %v75
  %752 = vmatpush2.msra.mxu0 %v74
  %753 = vmatprep.subr.mxu0 %v73
  %754 = vmatpush2.msra.mxu0 %v72
  %755 = vmatprep.subr.mxu0 %v71
  %756 = vmatpush2.msra.mxu0 %v70
  %757 = vmatprep.subr.mxu0 %v69
  %758 = vmatpush2.msra.mxu0 %v68
  %759 = vmatprep.subr.mxu0 %v67
  %760 = vmatpush2.msra.mxu0 %v66
  %761 = vmatprep.subr.mxu0 %v65
  %762 = vmatpush2.msra.mxu0 %v64
  %763 = vmatprep.subr.mxu0 %v63
  %764 = vmatpush2.msra.mxu0 %v62
  %765 = vmatprep.subr.mxu0 %v61
  %766 = vmatpush2.msra.mxu0 %v60
  %767 = vmatprep.mubr.f32.mxu0 %v624
  %768 = vmatmul.mubr.f32.gmra.mxu0 %v616
  %v769 = vpop.f32.mrf.mxu0
  %v770 = vadd.f32 0.0, %v769
  %v771 = vpop.f32.mrf.mxu0
  %v772 = vadd.f32 0.0, %v771
  %773 = vdwg.mxu0
  %774 = vmatprep.subr.mxu0 %v123
  %775 = vmatpush1.msra.mxu0 %v122
  %776 = vmatprep.subr.mxu0 %v121
  %777 = vmatpush1.msra.mxu0 %v120
  %778 = vmatprep.subr.mxu0 %v119
  %779 = vmatpush1.msra.mxu0 %v118
  %780 = vmatprep.subr.mxu0 %v117
  %781 = vmatpush1.msra.mxu0 %v116
  %782 = vmatprep.subr.mxu0 %v115
  %783 = vmatpush1.msra.mxu0 %v114
  %784 = vmatprep.subr.mxu0 %v113
  %785 = vmatpush1.msra.mxu0 %v112
  %786 = vmatprep.subr.mxu0 %v111
  %787 = vmatpush1.msra.mxu0 %v110
  %788 = vmatprep.subr.mxu0 %v109
  %789 = vmatpush1.msra.mxu0 %v108
  %790 = vmatprep.subr.mxu0 %v107
  %791 = vmatpush1.msra.mxu0 %v106
  %792 = vmatprep.subr.mxu0 %v105
  %793 = vmatpush1.msra.mxu0 %v104
  %794 = vmatprep.subr.mxu0 %v103
  %795 = vmatpush1.msra.mxu0 %v102
  %796 = vmatprep.subr.mxu0 %v101
  %797 = vmatpush1.msra.mxu0 %v100
  %798 = vmatprep.subr.mxu0 %v99
  %799 = vmatpush1.msra.mxu0 %v98
  %800 = vmatprep.subr.mxu0 %v97
  %801 = vmatpush1.msra.mxu0 %v96
  %802 = vmatprep.subr.mxu0 %v95
  %803 = vmatpush1.msra.mxu0 %v94
  %804 = vmatprep.subr.mxu0 %v93
  %805 = vmatpush1.msra.mxu0 %v92
  %806 = vmatprep.subr.mxu0 %v155
  %807 = vmatpush2.msra.mxu0 %v154
  %808 = vmatprep.subr.mxu0 %v153
  %809 = vmatpush2.msra.mxu0 %v152
  %810 = vmatprep.subr.mxu0 %v151
  %811 = vmatpush2.msra.mxu0 %v150
  %812 = vmatprep.subr.mxu0 %v149
  %813 = vmatpush2.msra.mxu0 %v148
  %814 = vmatprep.subr.mxu0 %v147
  %815 = vmatpush2.msra.mxu0 %v146
  %816 = vmatprep.subr.mxu0 %v145
  %817 = vmatpush2.msra.mxu0 %v144
  %818 = vmatprep.subr.mxu0 %v143
  %819 = vmatpush2.msra.mxu0 %v142
  %820 = vmatprep.subr.mxu0 %v141
  %821 = vmatpush2.msra.mxu0 %v140
  %822 = vmatprep.subr.mxu0 %v139
  %823 = vmatpush2.msra.mxu0 %v138
  %824 = vmatprep.subr.mxu0 %v137
  %825 = vmatpush2.msra.mxu0 %v136
  %826 = vmatprep.subr.mxu0 %v135
  %827 = vmatpush2.msra.mxu0 %v134
  %828 = vmatprep.subr.mxu0 %v133
  %829 = vmatpush2.msra.mxu0 %v132
  %830 = vmatprep.subr.mxu0 %v131
  %831 = vmatpush2.msra.mxu0 %v130
  %832 = vmatprep.subr.mxu0 %v129
  %833 = vmatpush2.msra.mxu0 %v128
  %834 = vmatprep.subr.mxu0 %v127
  %835 = vmatpush2.msra.mxu0 %v126
  %836 = vmatprep.subr.mxu0 %v125
  %837 = vmatpush2.msra.mxu0 %v124
  %838 = vmatprep.mubr.f32.mxu0 %v625
  %839 = vmatmul.mubr.f32.gmra.mxu0 %v623
  %v840 = vpop.f32.mrf.mxu0
  %v841 = vadd.f32 %v770, %v840
  %v842 = vpop.f32.mrf.mxu0
  %v843 = vadd.f32 %v772, %v842
  %844 = vdwg.mxu0
  %845 = vmatprep.subr.mxu0 %v187
  %846 = vmatpush1.msra.mxu0 %v186
  %847 = vmatprep.subr.mxu0 %v185
  %848 = vmatpush1.msra.mxu0 %v184
  %849 = vmatprep.subr.mxu0 %v183
  %850 = vmatpush1.msra.mxu0 %v182
  %851 = vmatprep.subr.mxu0 %v181
  %852 = vmatpush1.msra.mxu0 %v180
  %853 = vmatprep.subr.mxu0 %v179
  %854 = vmatpush1.msra.mxu0 %v178
  %855 = vmatprep.subr.mxu0 %v177
  %856 = vmatpush1.msra.mxu0 %v176
  %857 = vmatprep.subr.mxu0 %v175
  %858 = vmatpush1.msra.mxu0 %v174
  %859 = vmatprep.subr.mxu0 %v173
  %860 = vmatpush1.msra.mxu0 %v172
  %861 = vmatprep.subr.mxu0 %v171
  %862 = vmatpush1.msra.mxu0 %v170
  %863 = vmatprep.subr.mxu0 %v169
  %864 = vmatpush1.msra.mxu0 %v168
  %865 = vmatprep.subr.mxu0 %v167
  %866 = vmatpush1.msra.mxu0 %v166
  %867 = vmatprep.subr.mxu0 %v165
  %868 = vmatpush1.msra.mxu0 %v164
  %869 = vmatprep.subr.mxu0 %v163
  %870 = vmatpush1.msra.mxu0 %v162
  %871 = vmatprep.subr.mxu0 %v161
  %872 = vmatpush1.msra.mxu0 %v160
  %873 = vmatprep.subr.mxu0 %v159
  %874 = vmatpush1.msra.mxu0 %v158
  %875 = vmatprep.subr.mxu0 %v157
  %876 = vmatpush1.msra.mxu0 %v156
  %877 = vmatprep.subr.mxu0 %v219
  %878 = vmatpush2.msra.mxu0 %v218
  %879 = vmatprep.subr.mxu0 %v217
  %880 = vmatpush2.msra.mxu0 %v216
  %881 = vmatprep.subr.mxu0 %v215
  %882 = vmatpush2.msra.mxu0 %v214
  %883 = vmatprep.subr.mxu0 %v213
  %884 = vmatpush2.msra.mxu0 %v212
  %885 = vmatprep.subr.mxu0 %v211
  %886 = vmatpush2.msra.mxu0 %v210
  %887 = vmatprep.subr.mxu0 %v209
  %888 = vmatpush2.msra.mxu0 %v208
  %889 = vmatprep.subr.mxu0 %v207
  %890 = vmatpush2.msra.mxu0 %v206
  %891 = vmatprep.subr.mxu0 %v205
  %892 = vmatpush2.msra.mxu0 %v204
  %893 = vmatprep.subr.mxu0 %v203
  %894 = vmatpush2.msra.mxu0 %v202
  %895 = vmatprep.subr.mxu0 %v201
  %896 = vmatpush2.msra.mxu0 %v200
  %897 = vmatprep.subr.mxu0 %v199
  %898 = vmatpush2.msra.mxu0 %v198
  %899 = vmatprep.subr.mxu0 %v197
  %900 = vmatpush2.msra.mxu0 %v196
  %901 = vmatprep.subr.mxu0 %v195
  %902 = vmatpush2.msra.mxu0 %v194
  %903 = vmatprep.subr.mxu0 %v193
  %904 = vmatpush2.msra.mxu0 %v192
  %905 = vmatprep.subr.mxu0 %v191
  %906 = vmatpush2.msra.mxu0 %v190
  %907 = vmatprep.subr.mxu0 %v189
  %908 = vmatpush2.msra.mxu0 %v188
  %909 = vmatprep.mubr.f32.mxu0 %v641
  %910 = vmatmul.mubr.f32.gmra.mxu0 %v633
  %v911 = vpop.f32.mrf.mxu0
  %v912 = vadd.f32 %v841, %v911
  %v913 = vpop.f32.mrf.mxu0
  %v914 = vadd.f32 %v843, %v913
  %915 = vdwg.mxu0
  %916 = vmatprep.subr.mxu0 %v251
  %917 = vmatpush1.msra.mxu0 %v250
  %918 = vmatprep.subr.mxu0 %v249
  %919 = vmatpush1.msra.mxu0 %v248
  %920 = vmatprep.subr.mxu0 %v247
  %921 = vmatpush1.msra.mxu0 %v246
  %922 = vmatprep.subr.mxu0 %v245
  %923 = vmatpush1.msra.mxu0 %v244
  %924 = vmatprep.subr.mxu0 %v243
  %925 = vmatpush1.msra.mxu0 %v242
  %926 = vmatprep.subr.mxu0 %v241
  %927 = vmatpush1.msra.mxu0 %v240
  %928 = vmatprep.subr.mxu0 %v239
  %929 = vmatpush1.msra.mxu0 %v238
  %930 = vmatprep.subr.mxu0 %v237
  %931 = vmatpush1.msra.mxu0 %v236
  %932 = vmatprep.subr.mxu0 %v235
  %933 = vmatpush1.msra.mxu0 %v234
  %934 = vmatprep.subr.mxu0 %v233
  %935 = vmatpush1.msra.mxu0 %v232
  %936 = vmatprep.subr.mxu0 %v231
  %937 = vmatpush1.msra.mxu0 %v230
  %938 = vmatprep.subr.mxu0 %v229
  %939 = vmatpush1.msra.mxu0 %v228
  %940 = vmatprep.subr.mxu0 %v227
  %941 = vmatpush1.msra.mxu0 %v226
  %942 = vmatprep.subr.mxu0 %v225
  %943 = vmatpush1.msra.mxu0 %v224
  %944 = vmatprep.subr.mxu0 %v223
  %945 = vmatpush1.msra.mxu0 %v222
  %946 = vmatprep.subr.mxu0 %v221
  %947 = vmatpush1.msra.mxu0 %v220
  %948 = vmatprep.subr.mxu0 %v283
  %949 = vmatpush2.msra.mxu0 %v282
  %950 = vmatprep.subr.mxu0 %v281
  %951 = vmatpush2.msra.mxu0 %v280
  %952 = vmatprep.subr.mxu0 %v279
  %953 = vmatpush2.msra.mxu0 %v278
  %954 = vmatprep.subr.mxu0 %v277
  %955 = vmatpush2.msra.mxu0 %v276
  %956 = vmatprep.subr.mxu0 %v275
  %957 = vmatpush2.msra.mxu0 %v274
  %958 = vmatprep.subr.mxu0 %v273
  %959 = vmatpush2.msra.mxu0 %v272
  %960 = vmatprep.subr.mxu0 %v271
  %961 = vmatpush2.msra.mxu0 %v270
  %962 = vmatprep.subr.mxu0 %v269
  %963 = vmatpush2.msra.mxu0 %v268
  %964 = vmatprep.subr.mxu0 %v267
  %965 = vmatpush2.msra.mxu0 %v266
  %966 = vmatprep.subr.mxu0 %v265
  %967 = vmatpush2.msra.mxu0 %v264
  %968 = vmatprep.subr.mxu0 %v263
  %969 = vmatpush2.msra.mxu0 %v262
  %970 = vmatprep.subr.mxu0 %v261
  %971 = vmatpush2.msra.mxu0 %v260
  %972 = vmatprep.subr.mxu0 %v259
  %973 = vmatpush2.msra.mxu0 %v258
  %974 = vmatprep.subr.mxu0 %v257
  %975 = vmatpush2.msra.mxu0 %v256
  %976 = vmatprep.subr.mxu0 %v255
  %977 = vmatpush2.msra.mxu0 %v254
  %978 = vmatprep.subr.mxu0 %v253
  %979 = vmatpush2.msra.mxu0 %v252
  %980 = vmatprep.mubr.f32.mxu0 %v642
  %981 = vmatmul.mubr.f32.gmra.mxu0 %v640
  %v982 = vpop.f32.mrf.mxu0
  %v983 = vadd.f32 %v912, %v982
  %v984 = vpop.f32.mrf.mxu0
  %v985 = vadd.f32 %v914, %v984
  %986 = vdwg.mxu0
  %987 = vmatprep.subr.mxu0 %v315
  %988 = vmatpush1.msra.mxu0 %v314
  %989 = vmatprep.subr.mxu0 %v313
  %990 = vmatpush1.msra.mxu0 %v312
  %991 = vmatprep.subr.mxu0 %v311
  %992 = vmatpush1.msra.mxu0 %v310
  %993 = vmatprep.subr.mxu0 %v309
  %994 = vmatpush1.msra.mxu0 %v308
  %995 = vmatprep.subr.mxu0 %v307
  %996 = vmatpush1.msra.mxu0 %v306
  %997 = vmatprep.subr.mxu0 %v305
  %998 = vmatpush1.msra.mxu0 %v304
  %999 = vmatprep.subr.mxu0 %v303
  %1000 = vmatpush1.msra.mxu0 %v302
  %1001 = vmatprep.subr.mxu0 %v301
  %1002 = vmatpush1.msra.mxu0 %v300
  %1003 = vmatprep.subr.mxu0 %v299
  %1004 = vmatpush1.msra.mxu0 %v298
  %1005 = vmatprep.subr.mxu0 %v297
  %1006 = vmatpush1.msra.mxu0 %v296
  %1007 = vmatprep.subr.mxu0 %v295
  %1008 = vmatpush1.msra.mxu0 %v294
  %1009 = vmatprep.subr.mxu0 %v293
  %1010 = vmatpush1.msra.mxu0 %v292
  %1011 = vmatprep.subr.mxu0 %v291
  %1012 = vmatpush1.msra.mxu0 %v290
  %1013 = vmatprep.subr.mxu0 %v289
  %1014 = vmatpush1.msra.mxu0 %v288
  %1015 = vmatprep.subr.mxu0 %v287
  %1016 = vmatpush1.msra.mxu0 %v286
  %1017 = vmatprep.subr.mxu0 %v285
  %1018 = vmatpush1.msra.mxu0 %v284
  %1019 = vmatprep.subr.mxu0 %v347
  %1020 = vmatpush2.msra.mxu0 %v346
  %1021 = vmatprep.subr.mxu0 %v345
  %1022 = vmatpush2.msra.mxu0 %v344
  %1023 = vmatprep.subr.mxu0 %v343
  %1024 = vmatpush2.msra.mxu0 %v342
  %1025 = vmatprep.subr.mxu0 %v341
  %1026 = vmatpush2.msra.mxu0 %v340
  %1027 = vmatprep.subr.mxu0 %v339
  %1028 = vmatpush2.msra.mxu0 %v338
  %1029 = vmatprep.subr.mxu0 %v337
  %1030 = vmatpush2.msra.mxu0 %v336
  %1031 = vmatprep.subr.mxu0 %v335
  %1032 = vmatpush2.msra.mxu0 %v334
  %1033 = vmatprep.subr.mxu0 %v333
  %1034 = vmatpush2.msra.mxu0 %v332
  %1035 = vmatprep.subr.mxu0 %v331
  %1036 = vmatpush2.msra.mxu0 %v330
  %1037 = vmatprep.subr.mxu0 %v329
  %1038 = vmatpush2.msra.mxu0 %v328
  %1039 = vmatprep.subr.mxu0 %v327
  %1040 = vmatpush2.msra.mxu0 %v326
  %1041 = vmatprep.subr.mxu0 %v325
  %1042 = vmatpush2.msra.mxu0 %v324
  %1043 = vmatprep.subr.mxu0 %v323
  %1044 = vmatpush2.msra.mxu0 %v322
  %1045 = vmatprep.subr.mxu0 %v321
  %1046 = vmatpush2.msra.mxu0 %v320
  %1047 = vmatprep.subr.mxu0 %v319
  %1048 = vmatpush2.msra.mxu0 %v318
  %1049 = vmatprep.subr.mxu0 %v317
  %1050 = vmatpush2.msra.mxu0 %v316
  %1051 = vmatprep.mubr.f32.mxu0 %v658
  %1052 = vmatmul.mubr.f32.gmra.mxu0 %v650
  %v1053 = vpop.f32.mrf.mxu0
  %v1054 = vadd.f32 %v983, %v1053
  %v1055 = vpop.f32.mrf.mxu0
  %v1056 = vadd.f32 %v985, %v1055
  %1057 = vdwg.mxu0
  %1058 = vmatprep.subr.mxu0 %v379
  %1059 = vmatpush1.msra.mxu0 %v378
  %1060 = vmatprep.subr.mxu0 %v377
  %1061 = vmatpush1.msra.mxu0 %v376
  %1062 = vmatprep.subr.mxu0 %v375
  %1063 = vmatpush1.msra.mxu0 %v374
  %1064 = vmatprep.subr.mxu0 %v373
  %1065 = vmatpush1.msra.mxu0 %v372
  %1066 = vmatprep.subr.mxu0 %v371
  %1067 = vmatpush1.msra.mxu0 %v370
  %1068 = vmatprep.subr.mxu0 %v369
  %1069 = vmatpush1.msra.mxu0 %v368
  %1070 = vmatprep.subr.mxu0 %v367
  %1071 = vmatpush1.msra.mxu0 %v366
  %1072 = vmatprep.subr.mxu0 %v365
  %1073 = vmatpush1.msra.mxu0 %v364
  %1074 = vmatprep.subr.mxu0 %v363
  %1075 = vmatpush1.msra.mxu0 %v362
  %1076 = vmatprep.subr.mxu0 %v361
  %1077 = vmatpush1.msra.mxu0 %v360
  %1078 = vmatprep.subr.mxu0 %v359
  %1079 = vmatpush1.msra.mxu0 %v358
  %1080 = vmatprep.subr.mxu0 %v357
  %1081 = vmatpush1.msra.mxu0 %v356
  %1082 = vmatprep.subr.mxu0 %v355
  %1083 = vmatpush1.msra.mxu0 %v354
  %1084 = vmatprep.subr.mxu0 %v353
  %1085 = vmatpush1.msra.mxu0 %v352
  %1086 = vmatprep.subr.mxu0 %v351
  %1087 = vmatpush1.msra.mxu0 %v350
  %1088 = vmatprep.subr.mxu0 %v349
  %1089 = vmatpush1.msra.mxu0 %v348
  %1090 = vmatprep.subr.mxu0 %v411
  %1091 = vmatpush2.msra.mxu0 %v410
  %1092 = vmatprep.subr.mxu0 %v409
  %1093 = vmatpush2.msra.mxu0 %v408
  %1094 = vmatprep.subr.mxu0 %v407
  %1095 = vmatpush2.msra.mxu0 %v406
  %1096 = vmatprep.subr.mxu0 %v405
  %1097 = vmatpush2.msra.mxu0 %v404
  %1098 = vmatprep.subr.mxu0 %v403
  %1099 = vmatpush2.msra.mxu0 %v402
  %1100 = vmatprep.subr.mxu0 %v401
  %1101 = vmatpush2.msra.mxu0 %v400
  %1102 = vmatprep.subr.mxu0 %v399
  %1103 = vmatpush2.msra.mxu0 %v398
  %1104 = vmatprep.subr.mxu0 %v397
  %1105 = vmatpush2.msra.mxu0 %v396
  %1106 = vmatprep.subr.mxu0 %v395
  %1107 = vmatpush2.msra.mxu0 %v394
  %1108 = vmatprep.subr.mxu0 %v393
  %1109 = vmatpush2.msra.mxu0 %v392
  %1110 = vmatprep.subr.mxu0 %v391
  %1111 = vmatpush2.msra.mxu0 %v390
  %1112 = vmatprep.subr.mxu0 %v389
  %1113 = vmatpush2.msra.mxu0 %v388
  %1114 = vmatprep.subr.mxu0 %v387
  %1115 = vmatpush2.msra.mxu0 %v386
  %1116 = vmatprep.subr.mxu0 %v385
  %1117 = vmatpush2.msra.mxu0 %v384
  %1118 = vmatprep.subr.mxu0 %v383
  %1119 = vmatpush2.msra.mxu0 %v382
  %1120 = vmatprep.subr.mxu0 %v381
  %1121 = vmatpush2.msra.mxu0 %v380
  %1122 = vmatprep.mubr.f32.mxu0 %v659
  %1123 = vmatmul.mubr.f32.gmra.mxu0 %v657
  %v1124 = vpop.f32.mrf.mxu0
  %v1125 = vadd.f32 %v1054, %v1124
  %v1126 = vpop.f32.mrf.mxu0
  %v1127 = vadd.f32 %v1056, %v1126
  %1128 = vdwg.mxu0
  %1129 = vmatprep.subr.mxu0 %v443
  %1130 = vmatpush1.msra.mxu0 %v442
  %1131 = vmatprep.subr.mxu0 %v441
  %1132 = vmatpush1.msra.mxu0 %v440
  %1133 = vmatprep.subr.mxu0 %v439
  %1134 = vmatpush1.msra.mxu0 %v438
  %1135 = vmatprep.subr.mxu0 %v437
  %1136 = vmatpush1.msra.mxu0 %v436
  %1137 = vmatprep.subr.mxu0 %v435
  %1138 = vmatpush1.msra.mxu0 %v434
  %1139 = vmatprep.subr.mxu0 %v433
  %1140 = vmatpush1.msra.mxu0 %v432
  %1141 = vmatprep.subr.mxu0 %v431
  %1142 = vmatpush1.msra.mxu0 %v430
  %1143 = vmatprep.subr.mxu0 %v429
  %1144 = vmatpush1.msra.mxu0 %v428
  %1145 = vmatprep.subr.mxu0 %v427
  %1146 = vmatpush1.msra.mxu0 %v426
  %1147 = vmatprep.subr.mxu0 %v425
  %1148 = vmatpush1.msra.mxu0 %v424
  %1149 = vmatprep.subr.mxu0 %v423
  %1150 = vmatpush1.msra.mxu0 %v422
  %1151 = vmatprep.subr.mxu0 %v421
  %1152 = vmatpush1.msra.mxu0 %v420
  %1153 = vmatprep.subr.mxu0 %v419
  %1154 = vmatpush1.msra.mxu0 %v418
  %1155 = vmatprep.subr.mxu0 %v417
  %1156 = vmatpush1.msra.mxu0 %v416
  %1157 = vmatprep.subr.mxu0 %v415
  %1158 = vmatpush1.msra.mxu0 %v414
  %1159 = vmatprep.subr.mxu0 %v413
  %1160 = vmatpush1.msra.mxu0 %v412
  %1161 = vmatprep.subr.mxu0 %v475
  %1162 = vmatpush2.msra.mxu0 %v474
  %1163 = vmatprep.subr.mxu0 %v473
  %1164 = vmatpush2.msra.mxu0 %v472
  %1165 = vmatprep.subr.mxu0 %v471
  %1166 = vmatpush2.msra.mxu0 %v470
  %1167 = vmatprep.subr.mxu0 %v469
  %1168 = vmatpush2.msra.mxu0 %v468
  %1169 = vmatprep.subr.mxu0 %v467
  %1170 = vmatpush2.msra.mxu0 %v466
  %1171 = vmatprep.subr.mxu0 %v465
  %1172 = vmatpush2.msra.mxu0 %v464
  %1173 = vmatprep.subr.mxu0 %v463
  %1174 = vmatpush2.msra.mxu0 %v462
  %1175 = vmatprep.subr.mxu0 %v461
  %1176 = vmatpush2.msra.mxu0 %v460
  %1177 = vmatprep.subr.mxu0 %v459
  %1178 = vmatpush2.msra.mxu0 %v458
  %1179 = vmatprep.subr.mxu0 %v457
  %1180 = vmatpush2.msra.mxu0 %v456
  %1181 = vmatprep.subr.mxu0 %v455
  %1182 = vmatpush2.msra.mxu0 %v454
  %1183 = vmatprep.subr.mxu0 %v453
  %1184 = vmatpush2.msra.mxu0 %v452
  %1185 = vmatprep.subr.mxu0 %v451
  %1186 = vmatpush2.msra.mxu0 %v450
  %1187 = vmatprep.subr.mxu0 %v449
  %1188 = vmatpush2.msra.mxu0 %v448
  %1189 = vmatprep.subr.mxu0 %v447
  %1190 = vmatpush2.msra.mxu0 %v446
  %1191 = vmatprep.subr.mxu0 %v445
  %1192 = vmatpush2.msra.mxu0 %v444
  %1193 = vmatprep.mubr.f32.mxu0 %v675
  %1194 = vmatmul.mubr.f32.gmra.mxu0 %v667
  %v1195 = vpop.f32.mrf.mxu0
  %v1196 = vadd.f32 %v1125, %v1195
  %v1197 = vpop.f32.mrf.mxu0
  %v1198 = vadd.f32 %v1127, %v1197
  %1199 = vdwg.mxu0
  %1200 = vmatprep.subr.mxu0 %v507
  %1201 = vmatpush1.msra.mxu0 %v506
  %1202 = vmatprep.subr.mxu0 %v505
  %1203 = vmatpush1.msra.mxu0 %v504
  %1204 = vmatprep.subr.mxu0 %v503
  %1205 = vmatpush1.msra.mxu0 %v502
  %1206 = vmatprep.subr.mxu0 %v501
  %1207 = vmatpush1.msra.mxu0 %v500
  %1208 = vmatprep.subr.mxu0 %v499
  %1209 = vmatpush1.msra.mxu0 %v498
  %1210 = vmatprep.subr.mxu0 %v497
  %1211 = vmatpush1.msra.mxu0 %v496
  %1212 = vmatprep.subr.mxu0 %v495
  %1213 = vmatpush1.msra.mxu0 %v494
  %1214 = vmatprep.subr.mxu0 %v493
  %1215 = vmatpush1.msra.mxu0 %v492
  %1216 = vmatprep.subr.mxu0 %v491
  %1217 = vmatpush1.msra.mxu0 %v490
  %1218 = vmatprep.subr.mxu0 %v489
  %1219 = vmatpush1.msra.mxu0 %v488
  %1220 = vmatprep.subr.mxu0 %v487
  %1221 = vmatpush1.msra.mxu0 %v486
  %1222 = vmatprep.subr.mxu0 %v485
  %1223 = vmatpush1.msra.mxu0 %v484
  %1224 = vmatprep.subr.mxu0 %v483
  %1225 = vmatpush1.msra.mxu0 %v482
  %1226 = vmatprep.subr.mxu0 %v481
  %1227 = vmatpush1.msra.mxu0 %v480
  %1228 = vmatprep.subr.mxu0 %v479
  %1229 = vmatpush1.msra.mxu0 %v478
  %1230 = vmatprep.subr.mxu0 %v477
  %1231 = vmatpush1.msra.mxu0 %v476
  %1232 = vmatprep.subr.mxu0 %v539
  %1233 = vmatpush2.msra.mxu0 %v538
  %1234 = vmatprep.subr.mxu0 %v537
  %1235 = vmatpush2.msra.mxu0 %v536
  %1236 = vmatprep.subr.mxu0 %v535
  %1237 = vmatpush2.msra.mxu0 %v534
  %1238 = vmatprep.subr.mxu0 %v533
  %1239 = vmatpush2.msra.mxu0 %v532
  %1240 = vmatprep.subr.mxu0 %v531
  %1241 = vmatpush2.msra.mxu0 %v530
  %1242 = vmatprep.subr.mxu0 %v529
  %1243 = vmatpush2.msra.mxu0 %v528
  %1244 = vmatprep.subr.mxu0 %v527
  %1245 = vmatpush2.msra.mxu0 %v526
  %1246 = vmatprep.subr.mxu0 %v525
  %1247 = vmatpush2.msra.mxu0 %v524
  %1248 = vmatprep.subr.mxu0 %v523
  %1249 = vmatpush2.msra.mxu0 %v522
  %1250 = vmatprep.subr.mxu0 %v521
  %1251 = vmatpush2.msra.mxu0 %v520
  %1252 = vmatprep.subr.mxu0 %v519
  %1253 = vmatpush2.msra.mxu0 %v518
  %1254 = vmatprep.subr.mxu0 %v517
  %1255 = vmatpush2.msra.mxu0 %v516
  %1256 = vmatprep.subr.mxu0 %v515
  %1257 = vmatpush2.msra.mxu0 %v514
  %1258 = vmatprep.subr.mxu0 %v513
  %1259 = vmatpush2.msra.mxu0 %v512
  %1260 = vmatprep.subr.mxu0 %v511
  %1261 = vmatpush2.msra.mxu0 %v510
  %1262 = vmatprep.subr.mxu0 %v509
  %1263 = vmatpush2.msra.mxu0 %v508
  %1264 = vmatprep.mubr.f32.mxu0 %v676
  %1265 = vmatmul.mubr.f32.gmra.mxu0 %v674
  %v1266 = vpop.f32.mrf.mxu0
  %v1267 = vadd.f32 %v1196, %v1266
  %v1268 = vpop.f32.mrf.mxu0
  %v1269 = vadd.f32 %v1198, %v1268
  %1270 = vdwg.mxu0
  %1271 = vmatprep.subr.mxu0 %v571
  %1272 = vmatpush1.msra.mxu0 %v570
  %1273 = vmatprep.subr.mxu0 %v569
  %1274 = vmatpush1.msra.mxu0 %v568
  %1275 = vmatprep.subr.mxu0 %v567
  %1276 = vmatpush1.msra.mxu0 %v566
  %1277 = vmatprep.subr.mxu0 %v565
  %1278 = vmatpush1.msra.mxu0 %v564
  %1279 = vmatprep.subr.mxu0 %v563
  %1280 = vmatpush1.msra.mxu0 %v562
  %1281 = vmatprep.subr.mxu0 %v561
  %1282 = vmatpush1.msra.mxu0 %v560
  %1283 = vmatprep.subr.mxu0 %v559
  %1284 = vmatpush1.msra.mxu0 %v558
  %1285 = vmatprep.subr.mxu0 %v557
  %1286 = vmatpush1.msra.mxu0 %v556
  %1287 = vmatprep.subr.mxu0 %v555
  %1288 = vmatpush1.msra.mxu0 %v554
  %1289 = vmatprep.subr.mxu0 %v553
  %1290 = vmatpush1.msra.mxu0 %v552
  %1291 = vmatprep.subr.mxu0 %v551
  %1292 = vmatpush1.msra.mxu0 %v550
  %1293 = vmatprep.subr.mxu0 %v549
  %1294 = vmatpush1.msra.mxu0 %v548
  %1295 = vmatprep.subr.mxu0 %v547
  %1296 = vmatpush1.msra.mxu0 %v546
  %1297 = vmatprep.subr.mxu0 %v545
  %1298 = vmatpush1.msra.mxu0 %v544
  %1299 = vmatprep.subr.mxu0 %v543
  %1300 = vmatpush1.msra.mxu0 %v542
  %1301 = vmatprep.subr.mxu0 %v541
  %1302 = vmatpush1.msra.mxu0 %v540
  %1303 = vmatprep.subr.mxu0 %v603
  %1304 = vmatpush2.msra.mxu0 %v602
  %1305 = vmatprep.subr.mxu0 %v601
  %1306 = vmatpush2.msra.mxu0 %v600
  %1307 = vmatprep.subr.mxu0 %v599
  %1308 = vmatpush2.msra.mxu0 %v598
  %1309 = vmatprep.subr.mxu0 %v597
  %1310 = vmatpush2.msra.mxu0 %v596
  %1311 = vmatprep.subr.mxu0 %v595
  %1312 = vmatpush2.msra.mxu0 %v594
  %1313 = vmatprep.subr.mxu0 %v593
  %1314 = vmatpush2.msra.mxu0 %v592
  %1315 = vmatprep.subr.mxu0 %v591
  %1316 = vmatpush2.msra.mxu0 %v590
  %1317 = vmatprep.subr.mxu0 %v589
  %1318 = vmatpush2.msra.mxu0 %v588
  %1319 = vmatprep.subr.mxu0 %v587
  %1320 = vmatpush2.msra.mxu0 %v586
  %1321 = vmatprep.subr.mxu0 %v585
  %1322 = vmatpush2.msra.mxu0 %v584
  %1323 = vmatprep.subr.mxu0 %v583
  %1324 = vmatpush2.msra.mxu0 %v582
  %1325 = vmatprep.subr.mxu0 %v581
  %1326 = vmatpush2.msra.mxu0 %v580
  %1327 = vmatprep.subr.mxu0 %v579
  %1328 = vmatpush2.msra.mxu0 %v578
  %1329 = vmatprep.subr.mxu0 %v577
  %1330 = vmatpush2.msra.mxu0 %v576
  %1331 = vmatprep.subr.mxu0 %v575
  %1332 = vmatpush2.msra.mxu0 %v574
  %1333 = vmatprep.subr.mxu0 %v573
  %1334 = vmatpush2.msra.mxu0 %v572
  %1335 = vmatprep.mubr.f32.mxu0 %v684
  %1336 = vmatmul.mubr.f32.gmra.mxu0 %v683
  %v1337 = vpop.f32.mrf.mxu0
  %v1338 = vadd.f32 %v1267, %v1337
  %v1339 = vpop.f32.mrf.mxu0
  %v1340 = vadd.f32 %v1269, %v1339
  %1341 = vdwg.mxu0
  %v1344 = vcombine.low %v1338, %v1340
  %v1346 = vunpack.c.l.s4 1983009808
  %v1347 = vunpack.c.0.s8 %v1346
  %v1348 = vlaneseq
  %v1349 = vshrl.u32 %v1348, 7
  %v1350 = vsub.s32 %v1347, %v1349
  %v1351 = vrot.slane %v1344, %v1350
  %v1353 = vadd.f32 %v22, %v1351
  %vm1354 = vcmask 1041408
  %vm1355 = vcmask 519170
  %vm1356 = vmor %vm1355, %vm1354
  %1357 = vst.msk [vmem:[#allocation2] sm:$0xf] %vm1356, %v1353
  // Predicated region
  $region18: #{prior_pred_net.2} parent=0 // pred_check
    %p1358 = pneg %p14
  $region19: #{prior_pred_net.2} parent=0 // pred_check_branch
    %1360 = sbr.rel (%p1358) target = $region21
  $region20: #{prior_pred_net.2} parent=0 // pred_region
    %v1361 = vld [vmem:[#allocation2] sm:$0xf]
    %v1362 = vld [vmem:[%s2] sm:$0x3]
    %v1364 = vlaneseq
    %v1365 = vshrl.u32 %v1364, 7
    %v1366 = vsub.s32 0, %v1365
    %v1367 = vrot.slane %v1362, %v1366
    %v1368 = vlaneseq
    %v1369 = vshrl.u32 %v1368, 7
    %v1370 = vsub.s32 1, %v1369
    %v1371 = vrot.slane %v1362, %v1370
    %v1372 = vcombine.low %v1367, %v1371
    %v1374 = vunpack.c.l.s4 1983009808
    %v1375 = vunpack.c.0.s8 %v1374
    %v1376 = vlaneseq
    %v1377 = vshrl.u32 %v1376, 7
    %v1378 = vsub.s32 %v1375, %v1377
    %v1379 = vrot.slane %v1372, %v1378
    %v1381 = vadd.f32 %v1361, %v1379
    %v1382 = vmax.f32 %v1381, 0.0
    %1383 = vst.msk [vmem:[%s3] sm:$0xf] %vm1356, %v1382
  $region21: #{prior_pred_net.2} parent=0 // pred_fallthru
    _
  // Predicated region
  $region22: #{prior_pred_net.2} parent=0 // pred_check
    _
  $region23: #{prior_pred_net.2} parent=0 // pred_check_branch
    %1385 = sbr.rel (0) target = $region25
  $region24: #{prior_pred_net.2} parent=0 // pred_region
    _
  $region25: #{prior_pred_net.2} parent=0 // pred_fallthru
    _
  // Predicated region
  $region26: #{prior_pred_net.2} parent=0 // pred_check
    _
  $region27: #{prior_pred_net.2} parent=0 // pred_check_branch
    %1387 = sbr.rel (0) target = $region29
  $region28: #{prior_pred_net.2} parent=0 // pred_region
    _
  $region29: #{prior_pred_net.2} parent=0 // pred_fallthru
    _

</llo_original>
